<compile_context>
chip_gen: v7x
topology: tpu7x:2x2x1
jax: 0.10.0
libtpu: 0.0.40
codegen_flags: <defaults>
</compile_context>

<pallas_src>
import functools
import math

import jax
import jax.numpy as jnp
from jax.experimental import pallas as pl
from jax.experimental.pallas import tpu as pltpu


_TOKEN_TILE_CAP = 1024  # max tokens per grid step for the token-wise kernels


def _round_up(n, m):
    return ((n + m - 1) // m) * m


def _choose_tm(n, cap=_TOKEN_TILE_CAP):
    """Largest multiple-of-8 divisor of n that is <= cap and (when n >= 16)
    <= n // 2, so every grid has >= 2 steps for megacore sharding."""
    limit = min(cap, n if n < 16 else n // 2)
    best = 8
    t = 8
    while t <= limit:
        if n % t == 0:
            best = t
        t += 8
    return best


# ----------------------------- kernels ------------------------------------ #

def _ln_qkv_kernel(x_ref, a_ref, b_ref, w_ref, wb_ref, o_ref, *, eps):
    # x: (TM, D); a/b: (1, D); w: (D, 3D); wb: (1, 3D); o: (TM, 3D)
    x = x_ref[...]
    mean = jnp.mean(x, axis=-1, keepdims=True)
    xc = x - mean
    var = jnp.mean(xc * xc, axis=-1, keepdims=True)          # unbiased=False
    xn = a_ref[...] * (xc / (jnp.sqrt(var) + eps)) + b_ref[...]
    y = jnp.dot(xn, w_ref[...], preferred_element_type=jnp.float32)
    o_ref[...] = (y + wb_ref[...]).astype(o_ref.dtype)


def _mha_oproj_kernel(qkv_ref, mask_ref, wo_ref, bo_ref, xres_ref, o_ref, *,
                      num_heads, scale):
    # qkv: (1, S, 3D); mask: (1, 1, S); wo: (D, D); bo: (1, D);
    # xres: (1, S, D); o: (1, S, D)
    qkv = qkv_ref[0]                                   # (S, 3D)
    d3 = qkv.shape[-1]
    d = d3 // 3
    dk = d // num_heads
    q = qkv[:, 0:d]
    k = qkv[:, d:2 * d]
    v = qkv[:, 2 * d:3 * d]
    # Additive key-mask bias built in-kernel (VPU filler, hides under MXU/DMA).
    neg = jnp.where(mask_ref[0] == 0.0,
                    jnp.float32(-1e9), jnp.float32(0.0))     # (1, S)
    heads = []
    for h in range(num_heads):                               # static unroll
        qh = q[:, h * dk:(h + 1) * dk]
        kh = k[:, h * dk:(h + 1) * dk]
        vh = v[:, h * dk:(h + 1) * dk]
        s = jax.lax.dot_general(qh, kh, (((1,), (1,)), ((), ())),
                                preferred_element_type=jnp.float32) * scale
        s = s + neg                                          # (S,S) + (1,S)
        m = jnp.max(s, axis=-1, keepdims=True)
        p = jnp.exp(s - m)
        p = p / jnp.sum(p, axis=-1, keepdims=True)
        heads.append(jnp.dot(p, vh, preferred_element_type=jnp.float32))
    o_cat = jnp.concatenate(heads, axis=-1)                  # (S, D)
    y = jnp.dot(o_cat, wo_ref[...], preferred_element_type=jnp.float32)
    y = y + bo_ref[...] + xres_ref[0]                        # fused residual
    o_ref[0] = y.astype(o_ref.dtype)


def _ln_ffn_kernel(x_ref, a_ref, b_ref, w1_ref, b1_ref, w2_ref, b2_ref, o_ref,
                   *, eps):
    # x: (TM, D); w1: (D, DFF); w2: (DFF, D); o: (TM, D)
    x = x_ref[...]
    mean = jnp.mean(x, axis=-1, keepdims=True)
    xc = x - mean
    var = jnp.mean(xc * xc, axis=-1, keepdims=True)
    xn = a_ref[...] * (xc / (jnp.sqrt(var) + eps)) + b_ref[...]
    h = jnp.dot(xn, w1_ref[...], preferred_element_type=jnp.float32)
    h = jnp.maximum(h + b1_ref[...], 0.0)                    # (TM, DFF) on-chip
    y = jnp.dot(h, w2_ref[...], preferred_element_type=jnp.float32)
    y = y + b2_ref[...] + x                                  # fused residual
    o_ref[...] = y.astype(o_ref.dtype)


# ----------------------------- wrappers ------------------------------------ #

def _fused_ln_qkv(x2d, a, b, wqkv, bqkv, tm, eps):
    n, d = x2d.shape
    m3 = wqkv.shape[1]
    return pl.pallas_call(
        functools.partial(_ln_qkv_kernel, eps=eps),
        out_shape=jax.ShapeDtypeStruct((n, m3), x2d.dtype),
        grid_spec=pltpu.PrefetchScalarGridSpec(
            num_scalar_prefetch=0,
            grid=(n // tm,),
            in_specs=[
                pl.BlockSpec((tm, d), lambda i: (i, 0)),
                pl.BlockSpec((1, d), lambda i: (0, 0)),
                pl.BlockSpec((1, d), lambda i: (0, 0)),
                pl.BlockSpec((d, m3), lambda i: (0, 0)),
                pl.BlockSpec((1, m3), lambda i: (0, 0)),
            ],
            out_specs=pl.BlockSpec((tm, m3), lambda i: (i, 0)),
        ),
        compiler_params=pltpu.CompilerParams(dimension_semantics=("parallel",)),
    )(x2d, a.reshape(1, d), b.reshape(1, d), wqkv, bqkv.reshape(1, m3))


def _fused_mha_oproj(qkv3, key_mask, wo, bo, x3, *, num_heads, scale):
    bsz, s, d3 = qkv3.shape
    d = d3 // 3
    return pl.pallas_call(
        functools.partial(_mha_oproj_kernel, num_heads=num_heads, scale=scale),
        out_shape=jax.ShapeDtypeStruct((bsz, s, d), qkv3.dtype),
        grid_spec=pltpu.PrefetchScalarGridSpec(
            num_scalar_prefetch=0,
            grid=(bsz,),
            in_specs=[
                pl.BlockSpec((1, s, d3), lambda i: (i, 0, 0)),
                pl.BlockSpec((1, 1, s), lambda i: (i, 0, 0)),
                pl.BlockSpec((d, d), lambda i: (0, 0)),
                pl.BlockSpec((1, d), lambda i: (0, 0)),
                pl.BlockSpec((1, s, d), lambda i: (i, 0, 0)),
            ],
            out_specs=pl.BlockSpec((1, s, d), lambda i: (i, 0, 0)),
        ),
        compiler_params=pltpu.CompilerParams(dimension_semantics=("parallel",)),
    )(qkv3, key_mask, wo, bo.reshape(1, d), x3)


def _fused_ln_ffn(x2d, a, b, w1, b1, w2, b2, tm, eps):
    n, d = x2d.shape
    dff = w1.shape[1]
    return pl.pallas_call(
        functools.partial(_ln_ffn_kernel, eps=eps),
        out_shape=jax.ShapeDtypeStruct((n, d), x2d.dtype),
        grid_spec=pltpu.PrefetchScalarGridSpec(
            num_scalar_prefetch=0,
            grid=(n // tm,),
            in_specs=[
                pl.BlockSpec((tm, d), lambda i: (i, 0)),
                pl.BlockSpec((1, d), lambda i: (0, 0)),
                pl.BlockSpec((1, d), lambda i: (0, 0)),
                pl.BlockSpec((d, dff), lambda i: (0, 0)),
                pl.BlockSpec((1, dff), lambda i: (0, 0)),
                pl.BlockSpec((dff, d), lambda i: (0, 0)),
                pl.BlockSpec((1, d), lambda i: (0, 0)),
            ],
            out_specs=pl.BlockSpec((tm, d), lambda i: (i, 0)),
        ),
        compiler_params=pltpu.CompilerParams(dimension_semantics=("parallel",)),
    )(x2d, a.reshape(1, d), b.reshape(1, d), w1, b1.reshape(1, dff),
      w2, b2.reshape(1, d))


def encoder_block(x, mask, params, *, num_heads, eps=1e-6):
    """x: (B, S, D) f32; mask: (B, 1, 1, S), nonzero = attend."""
    B, S, D = x.shape
    H = num_heads
    dk = D // H
    s_pad = _round_up(S, 8)

    # (B,1,S) key mask (no (B,S,S) bias materialization).
    key_mask = (mask.reshape(B, 1, S) != 0).astype(x.dtype)
    if s_pad != S:                       # pad the token dimension exactly once
        x = jnp.pad(x, ((0, 0), (0, s_pad - S), (0, 0)))
        key_mask = jnp.pad(key_mask, ((0, 0), (0, 0), (0, s_pad - S)))

    n = B * s_pad
    tm = _choose_tm(n)
    x2d = x.reshape(n, D)                # contiguous reshape, no copy

    # Fused QKV weights (in a real model these would be stored pre-fused).
    wqkv = jnp.concatenate([params["wq"], params["wk"], params["wv"]], axis=1)
    bqkv = jnp.concatenate([params["bq"], params["bk"], params["bv"]])

    # ---- residual 1: x + O( softmax(QK^T/sqrt(dk) + mask) V ) ----
    qkv = _fused_ln_qkv(x2d, params["ln1_a"], params["ln1_b"],
                        wqkv, bqkv, tm, eps)                     # (N, 3D)
    qkv3 = qkv.reshape(B, s_pad, 3 * D)
    x3 = x2d.reshape(B, s_pad, D)
    x1 = _fused_mha_oproj(qkv3, key_mask, params["wo"], params["bo"], x3,
                          num_heads=H, scale=1.0 / math.sqrt(dk))  # (B,S,D)

    # ---- residual 2: x1 + FF(LN2(x1)) ----
    out2d = _fused_ln_ffn(x1.reshape(n, D), params["ln2_a"], params["ln2_b"],
                          params["w1"], params["b1"],
                          params["w2"], params["b2"], tm, eps)
    out = out2d.reshape(B, s_pad, D)
    if s_pad != S:                       # slice the padding exactly once
        out = out[:, :S, :]
    return out


# ----------------------------- reference ----------------------------------- #

def ref_encoder_block(x, mask, p, num_heads, eps=1e-6):
    hp = jax.lax.Precision.HIGHEST

    def ln(t, a, b):
        m = t.mean(-1, keepdims=True)
        s = jnp.sqrt(((t - m) ** 2).mean(-1, keepdims=True))
        return a * (t - m) / (s + eps) + b

    B, S, D = x.shape
    H = num_heads
    dk = D // H
    xn = ln(x, p["ln1_a"], p["ln1_b"])
    q = jnp.einsum("bsd,de->bse", xn, p["wq"], precision=hp) + p["bq"]
    k = jnp.einsum("bsd,de->bse", xn, p["wk"], precision=hp) + p["bk"]
    v = jnp.einsum("bsd,de->bse", xn, p["wv"], precision=hp) + p["bv"]

    def split(t):
        return t.reshape(B, S, H, dk).transpose(0, 2, 1, 3)

    q4, k4, v4 = split(q), split(k), split(v)
    scores = jnp.einsum("bhqd,bhkd->bhqk", q4, k4, precision=hp) / math.sqrt(dk)
    scores = scores + jnp.where(mask == 0, jnp.float32(-1e9), jnp.float32(0.0))
    pattn = jax.nn.softmax(scores, axis=-1)
    o4 = jnp.einsum("bhqk,bhkd->bhqd", pattn, v4, precision=hp)
    o = o4.transpose(0, 2, 1, 3).reshape(B, S, D)
    x1 = x + (jnp.einsum("bsd,de->bse", o, p["wo"], precision=hp) + p["bo"])
    x1n = ln(x1, p["ln2_a"], p["ln2_b"])
    h1 = jnp.maximum(
        jnp.einsum("bsd,df->bsf", x1n, p["w1"], precision=hp) + p["b1"], 0.0)
    x2 = x1 + (jnp.einsum("bsf,fd->bsd", h1, p["w2"], precision=hp) + p["b2"])
    return x2


# ------------------------------- main --------------------------------------- #

if __name__ == "__main__":
    B, S, D, H, DFF = 2, 8, 64, 4, 128

    key = jax.random.PRNGKey(0)
    ks = jax.random.split(key, 14)

    def w_init(k, shape, fan_in):
        return jax.random.normal(k, shape, dtype=jnp.float32) / math.sqrt(fan_in)

    def b_init(k, shape):
        return 0.1 * jax.random.normal(k, shape, dtype=jnp.float32)

    params = {
        "ln1_a": jnp.ones((D,), jnp.float32), "ln1_b": jnp.zeros((D,), jnp.float32),
        "ln2_a": jnp.ones((D,), jnp.float32), "ln2_b": jnp.zeros((D,), jnp.float32),
        "wq": w_init(ks[0], (D, D), D), "bq": b_init(ks[1], (D,)),
        "wk": w_init(ks[2], (D, D), D), "bk": b_init(ks[3], (D,)),
        "wv": w_init(ks[4], (D, D), D), "bv": b_init(ks[5], (D,)),
        "wo": w_init(ks[6], (D, D), D), "bo": b_init(ks[7], (D,)),
        "w1": w_init(ks[8], (D, DFF), D), "b1": b_init(ks[9], (DFF,)),
        "w2": w_init(ks[10], (DFF, D), DFF), "b2": b_init(ks[11], (D,)),
    }

    x = jax.random.normal(ks[12], (B, S, D), dtype=jnp.float32)
    lengths = jnp.array([S, S - 2], dtype=jnp.int32)
    mask = (jnp.arange(S)[None, :] < lengths[:, None]).astype(jnp.int32)
    mask = mask.reshape(B, 1, 1, S)

    run = jax.jit(functools.partial(encoder_block, num_heads=H))
    out = run(x, mask, params)
    out = jax.block_until_ready(out)

    ref = ref_encoder_block(x, mask, params, num_heads=H)
    assert out.shape == (B, S, D)
    assert jnp.allclose(out, ref, atol=5e-3, rtol=5e-3), (
        float(jnp.max(jnp.abs(out - ref))))

    print("KERNEL_OK")
</pallas_src>

<mosaic_0001>
module attributes {stable_mosaic.version = 11 : i64} {
  func.func @_ln_qkv_kernel(%arg0: i32, %arg1: memref<8x64xf32, #tpu.memory_space<vmem>>, %arg2: memref<1x64xf32, #tpu.memory_space<vmem>>, %arg3: memref<1x64xf32, #tpu.memory_space<vmem>>, %arg4: memref<64x192xf32, #tpu.memory_space<vmem>>, %arg5: memref<1x192xf32, #tpu.memory_space<vmem>>, %arg6: memref<8x192xf32, #tpu.memory_space<vmem>>) attributes {dimension_semantics = [#tpu.dimension_semantics<parallel>], iteration_bounds = array<i64: 2>, scalar_prefetch = 0 : i64, scratch_operands = 0 : i64, tpu.core_type = #tpu.core_type<tc>, window_params = [{transform_indices = @transform_0, window_bounds = array<i64: 8, 64>}, {pipeline_mode = #tpu.pipeline_mode<synchronous>, transform_indices = @transform_1, window_bounds = array<i64: 1, 64>}, {pipeline_mode = #tpu.pipeline_mode<synchronous>, transform_indices = @transform_2, window_bounds = array<i64: 1, 64>}, {pipeline_mode = #tpu.pipeline_mode<synchronous>, transform_indices = @transform_3, window_bounds = array<i64: 64, 192>}, {pipeline_mode = #tpu.pipeline_mode<synchronous>, transform_indices = @transform_4, window_bounds = array<i64: 1, 192>}, {transform_indices = @transform_5, window_bounds = array<i64: 8, 192>}]} {
    %c0 = arith.constant 0 : index
    %c0_0 = arith.constant 0 : index
    %0 = vector.load %arg1[%c0, %c0_0] : memref<8x64xf32, #tpu.memory_space<vmem>>, vector<8x64xf32>
    %cst = arith.constant dense<0.000000e+00> : vector<8xf32>
    %1 = vector.multi_reduction <add>, %0, %cst [1] : vector<8x64xf32> to vector<8xf32>
    %2 = vector.shape_cast %1 : vector<8xf32> to vector<8x1xf32>
    %cst_1 = arith.constant 6.400000e+01 : f32
    %3 = vector.broadcast %cst_1 : f32 to vector<8x1xf32>
    %4 = arith.divf %2, %3 : vector<8x1xf32>
    %5 = vector.broadcast %4 : vector<8x1xf32> to vector<8x64xf32>
    %6 = arith.subf %0, %5 : vector<8x64xf32>
    %7 = arith.mulf %6, %6 : vector<8x64xf32>
    %cst_2 = arith.constant dense<0.000000e+00> : vector<8xf32>
    %8 = vector.multi_reduction <add>, %7, %cst_2 [1] : vector<8x64xf32> to vector<8xf32>
    %9 = vector.shape_cast %8 : vector<8xf32> to vector<8x1xf32>
    %cst_3 = arith.constant 6.400000e+01 : f32
    %10 = vector.broadcast %cst_3 : f32 to vector<8x1xf32>
    %11 = arith.divf %9, %10 : vector<8x1xf32>
    %c0_4 = arith.constant 0 : index
    %c0_5 = arith.constant 0 : index
    %12 = vector.load %arg2[%c0_4, %c0_5] : memref<1x64xf32, #tpu.memory_space<vmem>>, vector<1x64xf32>
    %13 = math.sqrt %11 : vector<8x1xf32>
    %cst_6 = arith.constant 9.99999997E-7 : f32
    %14 = vector.broadcast %cst_6 : f32 to vector<8x1xf32>
    %15 = arith.addf %13, %14 : vector<8x1xf32>
    %16 = vector.broadcast %15 : vector<8x1xf32> to vector<8x64xf32>
    %17 = arith.divf %6, %16 : vector<8x64xf32>
    %18 = vector.broadcast %12 : vector<1x64xf32> to vector<8x64xf32>
    %19 = arith.mulf %18, %17 : vector<8x64xf32>
    %c0_7 = arith.constant 0 : index
    %c0_8 = arith.constant 0 : index
    %20 = vector.load %arg3[%c0_7, %c0_8] : memref<1x64xf32, #tpu.memory_space<vmem>>, vector<1x64xf32>
    %21 = vector.broadcast %20 : vector<1x64xf32> to vector<8x64xf32>
    %22 = arith.addf %19, %21 : vector<8x64xf32>
    %c0_9 = arith.constant 0 : index
    %c0_10 = arith.constant 0 : index
    %23 = vector.load %arg4[%c0_9, %c0_10] : memref<64x192xf32, #tpu.memory_space<vmem>>, vector<64x192xf32>
    %cst_11 = arith.constant dense<0.000000e+00> : vector<8x192xf32>
    %24 = tpu.matmul %22, %23, %cst_11 {dimension_numbers = #tpu.dot_dimension_numbers<[1], [0], [0], [1], [0, 0, 1, 1], [], []>} : vector<8x64xf32>, vector<64x192xf32>, vector<8x192xf32> -> vector<8x192xf32>
    %c0_12 = arith.constant 0 : index
    %c0_13 = arith.constant 0 : index
    %25 = vector.load %arg5[%c0_12, %c0_13] : memref<1x192xf32, #tpu.memory_space<vmem>>, vector<1x192xf32>
    %26 = vector.broadcast %25 : vector<1x192xf32> to vector<8x192xf32>
    %27 = arith.addf %24, %26 : vector<8x192xf32>
    %c0_14 = arith.constant 0 : index
    %c0_15 = arith.constant 0 : index
    %28 = vector.load %arg6[%c0_14, %c0_15] : memref<8x192xf32, #tpu.memory_space<vmem>>, vector<8x192xf32>
    tpu.vector_store %arg6[%c0_14, %c0_15], %27 {strides = array<i32>} : memref<8x192xf32, #tpu.memory_space<vmem>>, vector<8x192xf32>,
    return
  }
  func.func @transform_0(%arg0: i32) -> (i32, i32) {
    %c0_i32 = arith.constant 0 : i32
    %c0_i32_0 = arith.constant 0 : i32
    return %arg0, %c0_i32 : i32, i32
  }
  func.func @transform_1(%arg0: i32) -> (i32, i32) {
    %c0_i32 = arith.constant 0 : i32
    %c0_i32_0 = arith.constant 0 : i32
    %c0_i32_1 = arith.constant 0 : i32
    return %c0_i32, %c0_i32_0 : i32, i32
  }
  func.func @transform_2(%arg0: i32) -> (i32, i32) {
    %c0_i32 = arith.constant 0 : i32
    %c0_i32_0 = arith.constant 0 : i32
    %c0_i32_1 = arith.constant 0 : i32
    return %c0_i32, %c0_i32_0 : i32, i32
  }
  func.func @transform_3(%arg0: i32) -> (i32, i32) {
    %c0_i32 = arith.constant 0 : i32
    %c0_i32_0 = arith.constant 0 : i32
    %c0_i32_1 = arith.constant 0 : i32
    return %c0_i32, %c0_i32_0 : i32, i32
  }
  func.func @transform_4(%arg0: i32) -> (i32, i32) {
    %c0_i32 = arith.constant 0 : i32
    %c0_i32_0 = arith.constant 0 : i32
    %c0_i32_1 = arith.constant 0 : i32
    return %c0_i32, %c0_i32_0 : i32, i32
  }
  func.func @transform_5(%arg0: i32) -> (i32, i32) {
    %c0_i32 = arith.constant 0 : i32
    %c0_i32_0 = arith.constant 0 : i32
    return %arg0, %c0_i32 : i32, i32
  }
}

module attributes {stable_mosaic.version = 11 : i64} {
  func.func @_ln_ffn_kernel(%arg0: i32, %arg1: memref<8x64xf32, #tpu.memory_space<vmem>>, %arg2: memref<1x64xf32, #tpu.memory_space<vmem>>, %arg3: memref<1x64xf32, #tpu.memory_space<vmem>>, %arg4: memref<64x128xf32, #tpu.memory_space<vmem>>, %arg5: memref<1x128xf32, #tpu.memory_space<vmem>>, %arg6: memref<128x64xf32, #tpu.memory_space<vmem>>, %arg7: memref<1x64xf32, #tpu.memory_space<vmem>>, %arg8: memref<8x64xf32, #tpu.memory_space<vmem>>) attributes {dimension_semantics = [#tpu.dimension_semantics<parallel>], iteration_bounds = array<i64: 2>, scalar_prefetch = 0 : i64, scratch_operands = 0 : i64, tpu.core_type = #tpu.core_type<tc>, window_params = [{transform_indices = @transform_0, window_bounds = array<i64: 8, 64>}, {pipeline_mode = #tpu.pipeline_mode<synchronous>, transform_indices = @transform_1, window_bounds = array<i64: 1, 64>}, {pipeline_mode = #tpu.pipeline_mode<synchronous>, transform_indices = @transform_2, window_bounds = array<i64: 1, 64>}, {pipeline_mode = #tpu.pipeline_mode<synchronous>, transform_indices = @transform_3, window_bounds = array<i64: 64, 128>}, {pipeline_mode = #tpu.pipeline_mode<synchronous>, transform_indices = @transform_4, window_bounds = array<i64: 1, 128>}, {pipeline_mode = #tpu.pipeline_mode<synchronous>, transform_indices = @transform_5, window_bounds = array<i64: 128, 64>}, {pipeline_mode = #tpu.pipeline_mode<synchronous>, transform_indices = @transform_6, window_bounds = array<i64: 1, 64>}, {transform_indices = @transform_7, window_bounds = array<i64: 8, 64>}]} {
    %c0 = arith.constant 0 : index
    %c0_0 = arith.constant 0 : index
    %0 = vector.load %arg1[%c0, %c0_0] : memref<8x64xf32, #tpu.memory_space<vmem>>, vector<8x64xf32>
    %cst = arith.constant dense<0.000000e+00> : vector<8xf32>
    %1 = vector.multi_reduction <add>, %0, %cst [1] : vector<8x64xf32> to vector<8xf32>
    %2 = vector.shape_cast %1 : vector<8xf32> to vector<8x1xf32>
    %cst_1 = arith.constant 6.400000e+01 : f32
    %3 = vector.broadcast %cst_1 : f32 to vector<8x1xf32>
    %4 = arith.divf %2, %3 : vector<8x1xf32>
    %5 = vector.broadcast %4 : vector<8x1xf32> to vector<8x64xf32>
    %6 = arith.subf %0, %5 : vector<8x64xf32>
    %7 = arith.mulf %6, %6 : vector<8x64xf32>
    %cst_2 = arith.constant dense<0.000000e+00> : vector<8xf32>
    %8 = vector.multi_reduction <add>, %7, %cst_2 [1] : vector<8x64xf32> to vector<8xf32>
    %9 = vector.shape_cast %8 : vector<8xf32> to vector<8x1xf32>
    %cst_3 = arith.constant 6.400000e+01 : f32
    %10 = vector.broadcast %cst_3 : f32 to vector<8x1xf32>
    %11 = arith.divf %9, %10 : vector<8x1xf32>
    %c0_4 = arith.constant 0 : index
    %c0_5 = arith.constant 0 : index
    %12 = vector.load %arg2[%c0_4, %c0_5] : memref<1x64xf32, #tpu.memory_space<vmem>>, vector<1x64xf32>
    %13 = math.sqrt %11 : vector<8x1xf32>
    %cst_6 = arith.constant 9.99999997E-7 : f32
    %14 = vector.broadcast %cst_6 : f32 to vector<8x1xf32>
    %15 = arith.addf %13, %14 : vector<8x1xf32>
    %16 = vector.broadcast %15 : vector<8x1xf32> to vector<8x64xf32>
    %17 = arith.divf %6, %16 : vector<8x64xf32>
    %18 = vector.broadcast %12 : vector<1x64xf32> to vector<8x64xf32>
    %19 = arith.mulf %18, %17 : vector<8x64xf32>
    %c0_7 = arith.constant 0 : index
    %c0_8 = arith.constant 0 : index
    %20 = vector.load %arg3[%c0_7, %c0_8] : memref<1x64xf32, #tpu.memory_space<vmem>>, vector<1x64xf32>
    %21 = vector.broadcast %20 : vector<1x64xf32> to vector<8x64xf32>
    %22 = arith.addf %19, %21 : vector<8x64xf32>
    %c0_9 = arith.constant 0 : index
    %c0_10 = arith.constant 0 : index
    %23 = vector.load %arg4[%c0_9, %c0_10] : memref<64x128xf32, #tpu.memory_space<vmem>>, vector<64x128xf32>
    %cst_11 = arith.constant dense<0.000000e+00> : vector<8x128xf32>
    %24 = tpu.matmul %22, %23, %cst_11 {dimension_numbers = #tpu.dot_dimension_numbers<[1], [0], [0], [1], [0, 0, 1, 1], [], []>} : vector<8x64xf32>, vector<64x128xf32>, vector<8x128xf32> -> vector<8x128xf32>
    %c0_12 = arith.constant 0 : index
    %c0_13 = arith.constant 0 : index
    %25 = vector.load %arg5[%c0_12, %c0_13] : memref<1x128xf32, #tpu.memory_space<vmem>>, vector<1x128xf32>
    %26 = vector.broadcast %25 : vector<1x128xf32> to vector<8x128xf32>
    %27 = arith.addf %24, %26 : vector<8x128xf32>
    %cst_14 = arith.constant 0.000000e+00 : f32
    %28 = vector.broadcast %cst_14 : f32 to vector<8x128xf32>
    %29 = arith.maximumf %27, %28 : vector<8x128xf32>
    %c0_15 = arith.constant 0 : index
    %c0_16 = arith.constant 0 : index
    %30 = vector.load %arg6[%c0_15, %c0_16] : memref<128x64xf32, #tpu.memory_space<vmem>>, vector<128x64xf32>
    %cst_17 = arith.constant dense<0.000000e+00> : vector<8x64xf32>
    %31 = tpu.matmul %29, %30, %cst_17 {dimension_numbers = #tpu.dot_dimension_numbers<[1], [0], [0], [1], [0, 0, 1, 1], [], []>} : vector<8x128xf32>, vector<128x64xf32>, vector<8x64xf32> -> vector<8x64xf32>
    %c0_18 = arith.constant 0 : index
    %c0_19 = arith.constant 0 : index
    %32 = vector.load %arg7[%c0_18, %c0_19] : memref<1x64xf32, #tpu.memory_space<vmem>>, vector<1x64xf32>
    %33 = vector.broadcast %32 : vector<1x64xf32> to vector<8x64xf32>
    %34 = arith.addf %31, %33 : vector<8x64xf32>
    %35 = arith.addf %34, %0 : vector<8x64xf32>
    %c0_20 = arith.constant 0 : index
    %c0_21 = arith.constant 0 : index
    %36 = vector.load %arg8[%c0_20, %c0_21] : memref<8x64xf32, #tpu.memory_space<vmem>>, vector<8x64xf32>
    tpu.vector_store %arg8[%c0_20, %c0_21], %35 {strides = array<i32>} : memref<8x64xf32, #tpu.memory_space<vmem>>, vector<8x64xf32>,
    return
  }
  func.func @transform_0(%arg0: i32) -> (i32, i32) {
    %c0_i32 = arith.constant 0 : i32
    %c0_i32_0 = arith.constant 0 : i32
    return %arg0, %c0_i32 : i32, i32
  }
  func.func @transform_1(%arg0: i32) -> (i32, i32) {
    %c0_i32 = arith.constant 0 : i32
    %c0_i32_0 = arith.constant 0 : i32
    %c0_i32_1 = arith.constant 0 : i32
    return %c0_i32, %c0_i32_0 : i32, i32
  }
  func.func @transform_2(%arg0: i32) -> (i32, i32) {
    %c0_i32 = arith.constant 0 : i32
    %c0_i32_0 = arith.constant 0 : i32
    %c0_i32_1 = arith.constant 0 : i32
    return %c0_i32, %c0_i32_0 : i32, i32
  }
  func.func @transform_3(%arg0: i32) -> (i32, i32) {
    %c0_i32 = arith.constant 0 : i32
    %c0_i32_0 = arith.constant 0 : i32
    %c0_i32_1 = arith.constant 0 : i32
    return %c0_i32, %c0_i32_0 : i32, i32
  }
  func.func @transform_4(%arg0: i32) -> (i32, i32) {
    %c0_i32 = arith.constant 0 : i32
    %c0_i32_0 = arith.constant 0 : i32
    %c0_i32_1 = arith.constant 0 : i32
    return %c0_i32, %c0_i32_0 : i32, i32
  }
  func.func @transform_5(%arg0: i32) -> (i32, i32) {
    %c0_i32 = arith.constant 0 : i32
    %c0_i32_0 = arith.constant 0 : i32
    %c0_i32_1 = arith.constant 0 : i32
    return %c0_i32, %c0_i32_0 : i32, i32
  }
  func.func @transform_6(%arg0: i32) -> (i32, i32) {
    %c0_i32 = arith.constant 0 : i32
    %c0_i32_0 = arith.constant 0 : i32
    %c0_i32_1 = arith.constant 0 : i32
    return %c0_i32, %c0_i32_0 : i32, i32
  }
  func.func @transform_7(%arg0: i32) -> (i32, i32) {
    %c0_i32 = arith.constant 0 : i32
    %c0_i32_0 = arith.constant 0 : i32
    return %arg0, %c0_i32 : i32, i32
  }
}

module attributes {stable_mosaic.version = 11 : i64} {
  func.func @_mha_oproj_kernel(%arg0: i32, %arg1: memref<1x8x192xf32, #tpu.memory_space<vmem>>, %arg2: memref<1x1x8xf32, #tpu.memory_space<vmem>>, %arg3: memref<64x64xf32, #tpu.memory_space<vmem>>, %arg4: memref<1x64xf32, #tpu.memory_space<vmem>>, %arg5: memref<1x8x64xf32, #tpu.memory_space<vmem>>, %arg6: memref<1x8x64xf32, #tpu.memory_space<vmem>>) attributes {dimension_semantics = [#tpu.dimension_semantics<parallel>], iteration_bounds = array<i64: 2>, scalar_prefetch = 0 : i64, scratch_operands = 0 : i64, tpu.core_type = #tpu.core_type<tc>, window_params = [{transform_indices = @transform_0, window_bounds = array<i64: 1, 8, 192>}, {transform_indices = @transform_1, window_bounds = array<i64: 1, 1, 8>}, {pipeline_mode = #tpu.pipeline_mode<synchronous>, transform_indices = @transform_2, window_bounds = array<i64: 64, 64>}, {pipeline_mode = #tpu.pipeline_mode<synchronous>, transform_indices = @transform_3, window_bounds = array<i64: 1, 64>}, {transform_indices = @transform_4, window_bounds = array<i64: 1, 8, 64>}, {transform_indices = @transform_5, window_bounds = array<i64: 1, 8, 64>}]} {
    %c0 = arith.constant 0 : index
    %c0_0 = arith.constant 0 : index
    %c0_1 = arith.constant 0 : index
    %0 = vector.load %arg1[%c0, %c0_0, %c0_1] : memref<1x8x192xf32, #tpu.memory_space<vmem>>, vector<1x8x192xf32>
    %1 = vector.shape_cast %0 : vector<1x8x192xf32> to vector<8x192xf32>
    %2 = vector.extract_strided_slice %1 {offsets = [0, 0], sizes = [8, 64], strides = [1, 1]} : vector<8x192xf32> to vector<8x64xf32>
    %3 = vector.extract_strided_slice %1 {offsets = [0, 64], sizes = [8, 64], strides = [1, 1]} : vector<8x192xf32> to vector<8x64xf32>
    %4 = vector.extract_strided_slice %1 {offsets = [0, 128], sizes = [8, 64], strides = [1, 1]} : vector<8x192xf32> to vector<8x64xf32>
    %c0_2 = arith.constant 0 : index
    %c0_3 = arith.constant 0 : index
    %c0_4 = arith.constant 0 : index
    %5 = vector.load %arg2[%c0_2, %c0_3, %c0_4] : memref<1x1x8xf32, #tpu.memory_space<vmem>>, vector<1x1x8xf32>
    %6 = vector.shape_cast %5 : vector<1x1x8xf32> to vector<1x8xf32>
    %cst = arith.constant 0.000000e+00 : f32
    %7 = vector.broadcast %cst : f32 to vector<1x8xf32>
    %8 = arith.cmpf oeq, %6, %7 : vector<1x8xf32>
    %cst_5 = arith.constant -1.000000e+09 : f32
    %cst_6 = arith.constant 0.000000e+00 : f32
    %9 = vector.broadcast %cst_5 : f32 to vector<1x8xf32>
    %10 = vector.broadcast %cst_6 : f32 to vector<1x8xf32>
    %11 = arith.select %8, %9, %10 : vector<1x8xi1>, vector<1x8xf32>
    %12 = vector.extract_strided_slice %2 {offsets = [0, 0], sizes = [8, 16], strides = [1, 1]} : vector<8x64xf32> to vector<8x16xf32>
    %13 = vector.extract_strided_slice %3 {offsets = [0, 0], sizes = [8, 16], strides = [1, 1]} : vector<8x64xf32> to vector<8x16xf32>
    %14 = vector.extract_strided_slice %4 {offsets = [0, 0], sizes = [8, 16], strides = [1, 1]} : vector<8x64xf32> to vector<8x16xf32>
    %cst_7 = arith.constant dense<0.000000e+00> : vector<8x8xf32>
    %15 = tpu.matmul %12, %13, %cst_7 {dimension_numbers = #tpu.dot_dimension_numbers<[1], [1], [0], [0], [0, 0, 1, 0], [], []>} : vector<8x16xf32>, vector<8x16xf32>, vector<8x8xf32> -> vector<8x8xf32>
    %cst_8 = arith.constant 2.500000e-01 : f32
    %16 = vector.broadcast %cst_8 : f32 to vector<8x8xf32>
    %17 = arith.mulf %15, %16 : vector<8x8xf32>
    %18 = vector.broadcast %11 : vector<1x8xf32> to vector<8x8xf32>
    %19 = arith.addf %17, %18 : vector<8x8xf32>
    %cst_9 = arith.constant dense<0xFF800000> : vector<8xf32>
    %20 = vector.multi_reduction <maximumf>, %19, %cst_9 [1] : vector<8x8xf32> to vector<8xf32>
    %21 = vector.shape_cast %20 : vector<8xf32> to vector<8x1xf32>
    %22 = vector.broadcast %21 : vector<8x1xf32> to vector<8x8xf32>
    %23 = arith.subf %19, %22 : vector<8x8xf32>
    %24 = math.exp %23 : vector<8x8xf32>
    %cst_10 = arith.constant dense<0.000000e+00> : vector<8xf32>
    %25 = vector.multi_reduction <add>, %24, %cst_10 [1] : vector<8x8xf32> to vector<8xf32>
    %26 = vector.shape_cast %25 : vector<8xf32> to vector<8x1xf32>
    %27 = vector.broadcast %26 : vector<8x1xf32> to vector<8x8xf32>
    %28 = arith.divf %24, %27 : vector<8x8xf32>
    %cst_11 = arith.constant dense<0.000000e+00> : vector<8x16xf32>
    %29 = tpu.matmul %28, %14, %cst_11 {dimension_numbers = #tpu.dot_dimension_numbers<[1], [0], [0], [1], [0, 0, 1, 1], [], []>} : vector<8x8xf32>, vector<8x16xf32>, vector<8x16xf32> -> vector<8x16xf32>
    %30 = vector.extract_strided_slice %2 {offsets = [0, 16], sizes = [8, 16], strides = [1, 1]} : vector<8x64xf32> to vector<8x16xf32>
    %31 = vector.extract_strided_slice %3 {offsets = [0, 16], sizes = [8, 16], strides = [1, 1]} : vector<8x64xf32> to vector<8x16xf32>
    %32 = vector.extract_strided_slice %4 {offsets = [0, 16], sizes = [8, 16], strides = [1, 1]} : vector<8x64xf32> to vector<8x16xf32>
    %cst_12 = arith.constant dense<0.000000e+00> : vector<8x8xf32>
    %33 = tpu.matmul %30, %31, %cst_12 {dimension_numbers = #tpu.dot_dimension_numbers<[1], [1], [0], [0], [0, 0, 1, 0], [], []>} : vector<8x16xf32>, vector<8x16xf32>, vector<8x8xf32> -> vector<8x8xf32>
    %cst_13 = arith.constant 2.500000e-01 : f32
    %34 = vector.broadcast %cst_13 : f32 to vector<8x8xf32>
    %35 = arith.mulf %33, %34 : vector<8x8xf32>
    %36 = vector.broadcast %11 : vector<1x8xf32> to vector<8x8xf32>
    %37 = arith.addf %35, %36 : vector<8x8xf32>
    %cst_14 = arith.constant dense<0xFF800000> : vector<8xf32>
    %38 = vector.multi_reduction <maximumf>, %37, %cst_14 [1] : vector<8x8xf32> to vector<8xf32>
    %39 = vector.shape_cast %38 : vector<8xf32> to vector<8x1xf32>
    %40 = vector.broadcast %39 : vector<8x1xf32> to vector<8x8xf32>
    %41 = arith.subf %37, %40 : vector<8x8xf32>
    %42 = math.exp %41 : vector<8x8xf32>
    %cst_15 = arith.constant dense<0.000000e+00> : vector<8xf32>
    %43 = vector.multi_reduction <add>, %42, %cst_15 [1] : vector<8x8xf32> to vector<8xf32>
    %44 = vector.shape_cast %43 : vector<8xf32> to vector<8x1xf32>
    %45 = vector.broadcast %44 : vector<8x1xf32> to vector<8x8xf32>
    %46 = arith.divf %42, %45 : vector<8x8xf32>
    %cst_16 = arith.constant dense<0.000000e+00> : vector<8x16xf32>
    %47 = tpu.matmul %46, %32, %cst_16 {dimension_numbers = #tpu.dot_dimension_numbers<[1], [0], [0], [1], [0, 0, 1, 1], [], []>} : vector<8x8xf32>, vector<8x16xf32>, vector<8x16xf32> -> vector<8x16xf32>
    %48 = vector.extract_strided_slice %2 {offsets = [0, 32], sizes = [8, 16], strides = [1, 1]} : vector<8x64xf32> to vector<8x16xf32>
    %49 = vector.extract_strided_slice %3 {offsets = [0, 32], sizes = [8, 16], strides = [1, 1]} : vector<8x64xf32> to vector<8x16xf32>
    %50 = vector.extract_strided_slice %4 {offsets = [0, 32], sizes = [8, 16], strides = [1, 1]} : vector<8x64xf32> to vector<8x16xf32>
    %cst_17 = arith.constant dense<0.000000e+00> : vector<8x8xf32>
    %51 = tpu.matmul %48, %49, %cst_17 {dimension_numbers = #tpu.dot_dimension_numbers<[1], [1], [0], [0], [0, 0, 1, 0], [], []>} : vector<8x16xf32>, vector<8x16xf32>, vector<8x8xf32> -> vector<8x8xf32>
    %cst_18 = arith.constant 2.500000e-01 : f32
    %52 = vector.broadcast %cst_18 : f32 to vector<8x8xf32>
    %53 = arith.mulf %51, %52 : vector<8x8xf32>
    %54 = vector.broadcast %11 : vector<1x8xf32> to vector<8x8xf32>
    %55 = arith.addf %53, %54 : vector<8x8xf32>
    %cst_19 = arith.constant dense<0xFF800000> : vector<8xf32>
    %56 = vector.multi_reduction <maximumf>, %55, %cst_19 [1] : vector<8x8xf32> to vector<8xf32>
    %57 = vector.shape_cast %56 : vector<8xf32> to vector<8x1xf32>
    %58 = vector.broadcast %57 : vector<8x1xf32> to vector<8x8xf32>
    %59 = arith.subf %55, %58 : vector<8x8xf32>
    %60 = math.exp %59 : vector<8x8xf32>
    %cst_20 = arith.constant dense<0.000000e+00> : vector<8xf32>
    %61 = vector.multi_reduction <add>, %60, %cst_20 [1] : vector<8x8xf32> to vector<8xf32>
    %62 = vector.shape_cast %61 : vector<8xf32> to vector<8x1xf32>
    %63 = vector.broadcast %62 : vector<8x1xf32> to vector<8x8xf32>
    %64 = arith.divf %60, %63 : vector<8x8xf32>
    %cst_21 = arith.constant dense<0.000000e+00> : vector<8x16xf32>
    %65 = tpu.matmul %64, %50, %cst_21 {dimension_numbers = #tpu.dot_dimension_numbers<[1], [0], [0], [1], [0, 0, 1, 1], [], []>} : vector<8x8xf32>, vector<8x16xf32>, vector<8x16xf32> -> vector<8x16xf32>
    %66 = vector.extract_strided_slice %2 {offsets = [0, 48], sizes = [8, 16], strides = [1, 1]} : vector<8x64xf32> to vector<8x16xf32>
    %67 = vector.extract_strided_slice %3 {offsets = [0, 48], sizes = [8, 16], strides = [1, 1]} : vector<8x64xf32> to vector<8x16xf32>
    %68 = vector.extract_strided_slice %4 {offsets = [0, 48], sizes = [8, 16], strides = [1, 1]} : vector<8x64xf32> to vector<8x16xf32>
    %cst_22 = arith.constant dense<0.000000e+00> : vector<8x8xf32>
    %69 = tpu.matmul %66, %67, %cst_22 {dimension_numbers = #tpu.dot_dimension_numbers<[1], [1], [0], [0], [0, 0, 1, 0], [], []>} : vector<8x16xf32>, vector<8x16xf32>, vector<8x8xf32> -> vector<8x8xf32>
    %cst_23 = arith.constant 2.500000e-01 : f32
    %70 = vector.broadcast %cst_23 : f32 to vector<8x8xf32>
    %71 = arith.mulf %69, %70 : vector<8x8xf32>
    %72 = vector.broadcast %11 : vector<1x8xf32> to vector<8x8xf32>
    %73 = arith.addf %71, %72 : vector<8x8xf32>
    %cst_24 = arith.constant dense<0xFF800000> : vector<8xf32>
    %74 = vector.multi_reduction <maximumf>, %73, %cst_24 [1] : vector<8x8xf32> to vector<8xf32>
    %75 = vector.shape_cast %74 : vector<8xf32> to vector<8x1xf32>
    %76 = vector.broadcast %75 : vector<8x1xf32> to vector<8x8xf32>
    %77 = arith.subf %73, %76 : vector<8x8xf32>
    %78 = math.exp %77 : vector<8x8xf32>
    %cst_25 = arith.constant dense<0.000000e+00> : vector<8xf32>
    %79 = vector.multi_reduction <add>, %78, %cst_25 [1] : vector<8x8xf32> to vector<8xf32>
    %80 = vector.shape_cast %79 : vector<8xf32> to vector<8x1xf32>
    %81 = vector.broadcast %80 : vector<8x1xf32> to vector<8x8xf32>
    %82 = arith.divf %78, %81 : vector<8x8xf32>
    %cst_26 = arith.constant dense<0.000000e+00> : vector<8x16xf32>
    %83 = tpu.matmul %82, %68, %cst_26 {dimension_numbers = #tpu.dot_dimension_numbers<[1], [0], [0], [1], [0, 0, 1, 1], [], []>} : vector<8x8xf32>, vector<8x16xf32>, vector<8x16xf32> -> vector<8x16xf32>
    %84 = tpu.concatenate %29, %47, %65, %83 in 1 : vector<8x16xf32>, vector<8x16xf32>, vector<8x16xf32>, vector<8x16xf32> -> vector<8x64xf32>
    %c0_27 = arith.constant 0 : index
    %c0_28 = arith.constant 0 : index
    %85 = vector.load %arg3[%c0_27, %c0_28] : memref<64x64xf32, #tpu.memory_space<vmem>>, vector<64x64xf32>
    %cst_29 = arith.constant dense<0.000000e+00> : vector<8x64xf32>
    %86 = tpu.matmul %84, %85, %cst_29 {dimension_numbers = #tpu.dot_dimension_numbers<[1], [0], [0], [1], [0, 0, 1, 1], [], []>} : vector<8x64xf32>, vector<64x64xf32>, vector<8x64xf32> -> vector<8x64xf32>
    %c0_30 = arith.constant 0 : index
    %c0_31 = arith.constant 0 : index
    %87 = vector.load %arg4[%c0_30, %c0_31] : memref<1x64xf32, #tpu.memory_space<vmem>>, vector<1x64xf32>
    %88 = vector.broadcast %87 : vector<1x64xf32> to vector<8x64xf32>
    %89 = arith.addf %86, %88 : vector<8x64xf32>
    %c0_32 = arith.constant 0 : index
    %c0_33 = arith.constant 0 : index
    %c0_34 = arith.constant 0 : index
    %90 = vector.load %arg5[%c0_32, %c0_33, %c0_34] : memref<1x8x64xf32, #tpu.memory_space<vmem>>, vector<1x8x64xf32>
    %91 = vector.shape_cast %90 : vector<1x8x64xf32> to vector<8x64xf32>
    %92 = arith.addf %89, %91 : vector<8x64xf32>
    %c0_35 = arith.constant 0 : index
    %c0_36 = arith.constant 0 : index
    %c0_37 = arith.constant 0 : index
    %93 = vector.load %arg6[%c0_35, %c0_36, %c0_37] : memref<1x8x64xf32, #tpu.memory_space<vmem>>, vector<1x8x64xf32>
    %94 = vector.shape_cast %93 : vector<1x8x64xf32> to vector<8x64xf32>
    %95 = vector.shape_cast %92 : vector<8x64xf32> to vector<1x8x64xf32>
    tpu.vector_store %arg6[%c0_35, %c0_36, %c0_37], %95 {strides = array<i32>} : memref<1x8x64xf32, #tpu.memory_space<vmem>>, vector<1x8x64xf32>,
    return
  }
  func.func @transform_0(%arg0: i32) -> (i32, i32, i32) {
    %c0_i32 = arith.constant 0 : i32
    %c0_i32_0 = arith.constant 0 : i32
    %c0_i32_1 = arith.constant 0 : i32
    return %arg0, %c0_i32, %c0_i32_0 : i32, i32, i32
  }
  func.func @transform_1(%arg0: i32) -> (i32, i32, i32) {
    %c0_i32 = arith.constant 0 : i32
    %c0_i32_0 = arith.constant 0 : i32
    %c0_i32_1 = arith.constant 0 : i32
    return %arg0, %c0_i32, %c0_i32_0 : i32, i32, i32
  }
  func.func @transform_2(%arg0: i32) -> (i32, i32) {
    %c0_i32 = arith.constant 0 : i32
    %c0_i32_0 = arith.constant 0 : i32
    %c0_i32_1 = arith.constant 0 : i32
    return %c0_i32, %c0_i32_0 : i32, i32
  }
  func.func @transform_3(%arg0: i32) -> (i32, i32) {
    %c0_i32 = arith.constant 0 : i32
    %c0_i32_0 = arith.constant 0 : i32
    %c0_i32_1 = arith.constant 0 : i32
    return %c0_i32, %c0_i32_0 : i32, i32
  }
  func.func @transform_4(%arg0: i32) -> (i32, i32, i32) {
    %c0_i32 = arith.constant 0 : i32
    %c0_i32_0 = arith.constant 0 : i32
    %c0_i32_1 = arith.constant 0 : i32
    return %arg0, %c0_i32, %c0_i32_0 : i32, i32, i32
  }
  func.func @transform_5(%arg0: i32) -> (i32, i32, i32) {
    %c0_i32 = arith.constant 0 : i32
    %c0_i32_0 = arith.constant 0 : i32
    %c0_i32_1 = arith.constant 0 : i32
    return %arg0, %c0_i32, %c0_i32_0 : i32, i32, i32
  }
}

</mosaic_0001>

<llo_original>
// kernel: encoder_block.3
$region0: #{encoder_block.3}
  #allocation0 [shape = 'u32[]', space=smem, size = 0x4, offset = 0x4, fixed_abs, tag = 'smem constant byte address 0x4 - core index']
  #allocation1 [shape = 'u32[144,128]{1,0:T(1,128)}', space=vmem, size = 0x12000, scoped, tag = 'internal scratch']
  %s0 = inlined_call_operand.vmem [shape: f32[16,64], index: 0, kind: input, shape index: {}]
  %s1 = inlined_call_operand.vmem [shape: f32[1,64], index: 1, kind: input, shape index: {}]
  %s2 = inlined_call_operand.vmem [shape: f32[1,64], index: 2, kind: input, shape index: {}]
  %s3 = inlined_call_operand.vmem [shape: f32[64,192], index: 3, kind: input, shape index: {}]
  %s4 = inlined_call_operand.vmem [shape: f32[1,192], index: 4, kind: input, shape index: {}]
  %s5 = inlined_call_operand.vmem [shape: f32[16,192], index: 5, kind: output, shape index: {}]
  %s6 = sld [smem:[#allocation0]]
  $region53: #{encoder_block.3} parent=0
    _
  %s8 = ssub.s32 1, %s6
  %s9 = scalar_select 0, %s8, %s6
  loop: start=0, step=1, limit=4
  $region2: #{encoder_block.3} parent=0 // loop_pre_header
    _
  $region3: #{encoder_block.3} parent=0 // loop_header
    %s11 = sphi 0, %s15
    %p12 = scmp.ge.s32.totalorder %s11, 4
    %s21 = sphi 0, %s23
    %s24 = sphi 0, %s21
    %s25 = sphi 0, %s24
    %s41 = sphi 0, %s25
    %s45 = sphi 0, %s45
    %s47 = sphi 0, %s45
    %s48 = sphi 0, %s47
    %s62 = sphi 0, %s48
    %s66 = sphi 0, %s66
    %s68 = sphi 0, %s66
    %s69 = sphi 0, %s68
    %s83 = sphi 0, %s69
    %s87 = sphi 0, %s87
    %s89 = sphi 0, %s87
    %s90 = sphi 0, %s89
    %s104 = sphi 0, %s90
    %s108 = sphi 0, %s108
    %s110 = sphi 0, %s108
    %s111 = sphi 0, %s110
    %s125 = sphi 0, %s111
    %s131 = sphi 0, %s133
    %s134 = sphi 0, %s131
    %s135 = sphi 0, %s134
    %s151 = sphi 0, %s135
  $region4: #{encoder_block.3} parent=0 // loop_header_branch
    %14 = sbr.rel (%p12) target = $region8
  $region5: #{encoder_block.3} parent=0 // loop_body
    %s16 = ssub.s32 %s11, 1
    %s17 = ssub.s32 %s11, 2
    %s18 = sadd.s32 %s11, 1
    %s19 = ssub.s32 %s11, %s18
    %p20 = scmp.eq.s32.totalorder %s19, 0
    %s22 = sadd.s32 %s21, 1
    %s23 = scalar_select %p20, %s21, %s22
    %p26 = pneg %p20
    %p27 = scmp.eq.s32.totalorder %s11, 1
    %p28 = por %p26, %p27
    %p29 = scmp.ne.s32.totalorder %s21, %s24
    %p30 = scmp.eq.s32.totalorder %s11, 0
    %p31 = por %p29, %p30
    %p32 = scmp.ne.s32.totalorder %s21, %s24
    %p33 = scmp.eq.s32.totalorder %s16, 1
    %p34 = por %p32, %p33
    %p35 = scmp.ne.s32.totalorder %s24, %s25
    %p36 = scmp.eq.s32.totalorder %s16, 0
    %p37 = por %p35, %p36
    %p38 = scmp.ne.s32.totalorder %s24, %s25
    %p39 = scmp.eq.s32.totalorder %s17, 1
    %p40 = por %p38, %p39
    %p42 = scmp.ne.s32.totalorder %s25, %s41
    %p43 = scmp.eq.s32.totalorder %s17, 0
    %p44 = por %p42, %p43
    %s46 = sadd.s32 %s45, 1
    %p49 = scmp.eq.s32.totalorder %s11, 1
    %p50 = scmp.ne.s32.totalorder %s45, %s47
    %p51 = scmp.eq.s32.totalorder %s11, 0
    %p52 = por %p50, %p51
    %p53 = scmp.ne.s32.totalorder %s45, %s47
    %p54 = scmp.eq.s32.totalorder %s16, 1
    %p55 = por %p53, %p54
    %p56 = scmp.ne.s32.totalorder %s47, %s48
    %p57 = scmp.eq.s32.totalorder %s16, 0
    %p58 = por %p56, %p57
    %p59 = scmp.ne.s32.totalorder %s47, %s48
    %p60 = scmp.eq.s32.totalorder %s17, 1
    %p61 = por %p59, %p60
    %p63 = scmp.ne.s32.totalorder %s48, %s62
    %p64 = scmp.eq.s32.totalorder %s17, 0
    %p65 = por %p63, %p64
    %s67 = sadd.s32 %s66, 1
    %p70 = scmp.eq.s32.totalorder %s11, 1
    %p71 = scmp.ne.s32.totalorder %s66, %s68
    %p72 = scmp.eq.s32.totalorder %s11, 0
    %p73 = por %p71, %p72
    %p74 = scmp.ne.s32.totalorder %s66, %s68
    %p75 = scmp.eq.s32.totalorder %s16, 1
    %p76 = por %p74, %p75
    %p77 = scmp.ne.s32.totalorder %s68, %s69
    %p78 = scmp.eq.s32.totalorder %s16, 0
    %p79 = por %p77, %p78
    %p80 = scmp.ne.s32.totalorder %s68, %s69
    %p81 = scmp.eq.s32.totalorder %s17, 1
    %p82 = por %p80, %p81
    %p84 = scmp.ne.s32.totalorder %s69, %s83
    %p85 = scmp.eq.s32.totalorder %s17, 0
    %p86 = por %p84, %p85
    %s88 = sadd.s32 %s87, 1
    %p91 = scmp.eq.s32.totalorder %s11, 1
    %p92 = scmp.ne.s32.totalorder %s87, %s89
    %p93 = scmp.eq.s32.totalorder %s11, 0
    %p94 = por %p92, %p93
    %p95 = scmp.ne.s32.totalorder %s87, %s89
    %p96 = scmp.eq.s32.totalorder %s16, 1
    %p97 = por %p95, %p96
    %p98 = scmp.ne.s32.totalorder %s89, %s90
    %p99 = scmp.eq.s32.totalorder %s16, 0
    %p100 = por %p98, %p99
    %p101 = scmp.ne.s32.totalorder %s89, %s90
    %p102 = scmp.eq.s32.totalorder %s17, 1
    %p103 = por %p101, %p102
    %p105 = scmp.ne.s32.totalorder %s90, %s104
    %p106 = scmp.eq.s32.totalorder %s17, 0
    %p107 = por %p105, %p106
    %s109 = sadd.s32 %s108, 1
    %p112 = scmp.eq.s32.totalorder %s11, 1
    %p113 = scmp.ne.s32.totalorder %s108, %s110
    %p114 = scmp.eq.s32.totalorder %s11, 0
    %p115 = por %p113, %p114
    %p116 = scmp.ne.s32.totalorder %s108, %s110
    %p117 = scmp.eq.s32.totalorder %s16, 1
    %p118 = por %p116, %p117
    %p119 = scmp.ne.s32.totalorder %s110, %s111
    %p120 = scmp.eq.s32.totalorder %s16, 0
    %p121 = por %p119, %p120
    %p122 = scmp.ne.s32.totalorder %s110, %s111
    %p123 = scmp.eq.s32.totalorder %s17, 1
    %p124 = por %p122, %p123
    %p126 = scmp.ne.s32.totalorder %s111, %s125
    %p127 = scmp.eq.s32.totalorder %s17, 0
    %p128 = por %p126, %p127
    %s129 = ssub.s32 %s11, %s18
    %p130 = scmp.eq.s32.totalorder %s129, 0
    %s132 = sadd.s32 %s131, 1
    %s133 = scalar_select %p130, %s131, %s132
    %p136 = pneg %p130
    %p137 = scmp.eq.s32.totalorder %s11, 1
    %p138 = por %p136, %p137
    %p139 = scmp.ne.s32.totalorder %s131, %s134
    %p140 = scmp.eq.s32.totalorder %s11, 0
    %p141 = por %p139, %p140
    %p142 = scmp.ne.s32.totalorder %s131, %s134
    %p143 = scmp.eq.s32.totalorder %s16, 1
    %p144 = por %p142, %p143
    %p145 = scmp.ne.s32.totalorder %s134, %s135
    %p146 = scmp.eq.s32.totalorder %s16, 0
    %p147 = por %p145, %p146
    %p148 = scmp.ne.s32.totalorder %s134, %s135
    %p149 = scmp.eq.s32.totalorder %s17, 1
    %p150 = por %p148, %p149
    %p152 = scmp.ne.s32.totalorder %s135, %s151
    %p153 = scmp.eq.s32.totalorder %s17, 0
    %p154 = por %p152, %p153
    %p155 = scmp.le.s32.totalorder 1, %s11
    %p156 = scmp.lt.s32.totalorder %s11, 3
    %p157 = pnand %p155, %p156
    %p158 = pneg %p157
    // Predicated region
    $region9: #{encoder_block.3} parent=5 // pred_check
      _
    $region10: #{encoder_block.3} parent=5 // pred_check_branch
      %160 = sbr.rel (%p157) target = $region12
    $region11: #{encoder_block.3} parent=5 // pred_region
      %s161 = ssub.s32 %s11, 1
      // Predicated region
      $region13: #{encoder_block.3} parent=11 // pred_check
        %p162 = pneg %p58
      $region14: #{encoder_block.3} parent=11 // pred_check_branch
        %164 = sbr.rel (%p162) target = $region16
      $region15: #{encoder_block.3} parent=11 // pred_region
        _
      $region16: #{encoder_block.3} parent=11 // pred_fallthru
        _
      // Predicated region
      $region17: #{encoder_block.3} parent=11 // pred_check
        %p165 = pneg %p79
      $region18: #{encoder_block.3} parent=11 // pred_check_branch
        %167 = sbr.rel (%p165) target = $region20
      $region19: #{encoder_block.3} parent=11 // pred_region
        _
      $region20: #{encoder_block.3} parent=11 // pred_fallthru
        _
      // Predicated region
      $region21: #{encoder_block.3} parent=11 // pred_check
        %p168 = pneg %p100
      $region22: #{encoder_block.3} parent=11 // pred_check_branch
        %170 = sbr.rel (%p168) target = $region24
      $region23: #{encoder_block.3} parent=11 // pred_region
        _
      $region24: #{encoder_block.3} parent=11 // pred_fallthru
        _
      // Predicated region
      $region25: #{encoder_block.3} parent=11 // pred_check
        %p171 = pneg %p121
      $region26: #{encoder_block.3} parent=11 // pred_check_branch
        %173 = sbr.rel (%p171) target = $region28
      $region27: #{encoder_block.3} parent=11 // pred_region
        _
      $region28: #{encoder_block.3} parent=11 // pred_fallthru
        _
    $region12: #{encoder_block.3} parent=5 // pred_fallthru
      _
    %p174 = scmp.lt.s32.totalorder %s11, 2
    // Predicated region
    $region29: #{encoder_block.3} parent=5 // pred_check
      %p175 = pneg %p174
    $region30: #{encoder_block.3} parent=5 // pred_check_branch
      %177 = sbr.rel (%p175) target = $region32
    $region31: #{encoder_block.3} parent=5 // pred_region
      // Predicated region
      $region33: #{encoder_block.3} parent=31 // pred_check
        %p178 = pneg %p31
      $region34: #{encoder_block.3} parent=31 // pred_check_branch
        %180 = sbr.rel (%p178) target = $region36
      $region35: #{encoder_block.3} parent=31 // pred_region
        %p181 = scmp.lt.s32.totalorder %s11, 1
        %s182 = scalar_select %p181, %s11, 1
        %s183 = smul.addr %s182, 8
        %s184 = scalar_lea.vmem %s0, %s183
      $region36: #{encoder_block.3} parent=31 // pred_fallthru
        _
    $region32: #{encoder_block.3} parent=5 // pred_fallthru
      _
    %p185 = scmp.le.s32.totalorder 1, %s11
    %p186 = scmp.lt.s32.totalorder %s11, 3
    %p187 = pnand %p185, %p186
    %p188 = pneg %p187
    // Predicated region
    $region37: #{encoder_block.3} parent=5 // pred_check
      _
    $region38: #{encoder_block.3} parent=5 // pred_check_branch
      %190 = sbr.rel (%p187) target = $region40
    $region39: #{encoder_block.3} parent=5 // pred_region
      %s191 = ssub.s32 %s11, 1
      %p192 = scmp.lt.s32.totalorder %s16, 1
      %s193 = scalar_select %p192, %s16, 1
      %s194 = smul.addr %s193, 8
      %s195 = scalar_lea.vmem %s0, %s194
      %p196 = pneg %p37
      %p197 = pneg %p34
      %p198 = pneg %p58
      %p199 = pneg %p55
      %p200 = pneg %p79
      %p201 = pneg %p76
      %p202 = pneg %p100
      %p203 = pneg %p97
      %p204 = pneg %p121
      %p205 = pneg %p118
      %p206 = pneg %p147
      %p207 = pneg %p144
      %p208 = scmp.lt.s32.totalorder %s16, 1
      %s209 = scalar_select %p208, %s16, 1
      %s210 = smul.addr %s209, 2
      %s211 = smul.addr %s210, 8
      %s212 = scalar_lea.vmem %s5, %s211
      %p213 = scmp.lt.s32.totalorder %s16, 1
      %s214 = scalar_select %p213, %s16, 1
      %s215 = smul.addr %s214, 8
      %s216 = scalar_lea.vmem %s0, %s215
      %p217 = scmp.lt.s32.totalorder %s16, 1
      %s218 = scalar_select %p217, %s16, 1
      %s219 = smul.addr %s218, 2
      %s220 = smul.addr %s219, 8
      %s221 = scalar_lea.vmem %s5, %s220
      %v222 = vld [vmem:[%s216] sm:$0xff]
      %vm223 = vcmask 523264
      %v224 = vsel %vm223, %v222, 0.0
      %225 = vadd.xlane.f32.xlu0 %v224
      %v226 = vpop.xlane.xlu0 %225
      %v227 = vrcp.pop 64.0
      %v228 = vmul.f32 %v226, %v227
      %v229 = vsub.f32 %v222, %v228
      %v230 = vmul.f32 %v229, %v229
      %v231 = vsel %vm223, %v230, 0.0
      %232 = vadd.xlane.f32.xlu0 %v231
      %v233 = vpop.xlane.xlu0 %232
      %v234 = vmul.f32 %v233, %v227
      %v235 = vld [vmem:[%s1] sm:$0x1]
      %v236 = vrsqrt.pop %v234
      %v237 = vmul.f32 %v234, %v236
      %vm238 = vcmp.eq.f32.partialorder %v234, inf
      %v239 = vsel %vm238, %v234, %v237
      %vm240 = vcmp.eq.f32.partialorder %v234, 0.0
      %v241 = vand.u32 %v234, 2147483648
      %v242 = vsel %vm240, %v241, %v239
      %v243 = vadd.f32 %v242, 1e-06
      %v244 = vrcp.pop %v243
      %v245 = vmul.f32 %v229, %v244
      %v247 = vlaneseq
      %v248 = vshrl.u32 %v247, 7
      %v249 = vsub.s32 0, %v248
      %v250 = vrot.slane %v235, %v249
      %v252 = vmul.f32 %v250, %v245
      %v253 = vld [vmem:[%s2] sm:$0x1]
      %v255 = vlaneseq
      %v256 = vshrl.u32 %v255, 7
      %v257 = vsub.s32 0, %v256
      %v258 = vrot.slane %v253, %v257
      %v260 = vadd.f32 %v252, %v258
      %v261 = vld [vmem:[%s3] sm:$0xff]
      %v262 = vld [vmem:[%s3 + $0x8] sm:$0xff]
      %v263 = vld [vmem:[%s3 + $0x10] sm:$0xff]
      %v264 = vld [vmem:[%s3 + $0x18] sm:$0xff]
      %v265 = vld [vmem:[%s3 + $0x20] sm:$0xff]
      %v266 = vld [vmem:[%s3 + $0x28] sm:$0xff]
      %v267 = vld [vmem:[%s3 + $0x30] sm:$0xff]
      %v268 = vld [vmem:[%s3 + $0x38] sm:$0xff]
      %v269 = vld [vmem:[%s3 + $0x40] sm:$0xff]
      %v270 = vld [vmem:[%s3 + $0x48] sm:$0xff]
      %v271 = vld [vmem:[%s3 + $0x50] sm:$0xff]
      %v272 = vld [vmem:[%s3 + $0x58] sm:$0xff]
      %v273 = vld [vmem:[%s3 + $0x60] sm:$0xff]
      %v274 = vld [vmem:[%s3 + $0x68] sm:$0xff]
      %v275 = vld [vmem:[%s3 + $0x70] sm:$0xff]
      %v276 = vld [vmem:[%s3 + $0x78] sm:$0xff]
      %v277 = vld [vmem:[%s4] sm:$0x3]
      %v279 = vlaneseq
      %v280 = vshrl.u32 %v279, 7
      %v281 = vsub.s32 0, %v280
      %v282 = vrot.slane %v277, %v281
      %v283 = vlaneseq
      %v284 = vshrl.u32 %v283, 7
      %v285 = vsub.s32 1, %v284
      %v286 = vrot.slane %v277, %v285
      %v290 = vsel %vm223, %v260, 0
      %292 = vmatprep.subr.mxu0 %v262
      %293 = vmatpush1.msra.mxu0 %v261
      %294 = vmatprep.subr.mxu0 %v264
      %295 = vmatpush1.msra.mxu0 %v263
      %296 = vmatprep.subr.mxu0 %v266
      %297 = vmatpush1.msra.mxu0 %v265
      %298 = vmatprep.subr.mxu0 %v268
      %299 = vmatpush1.msra.mxu0 %v267
      %300 = vmatprep.subr.mxu0 %v270
      %301 = vmatpush1.msra.mxu0 %v269
      %302 = vmatprep.subr.mxu0 %v272
      %303 = vmatpush1.msra.mxu0 %v271
      %304 = vmatprep.subr.mxu0 %v274
      %305 = vmatpush1.msra.mxu0 %v273
      %306 = vmatprep.subr.mxu0 %v276
      %307 = vmatpush1.msra.mxu0 %v275
      %308 = vmatprep.subr.mxu0 0.0
      %309 = vmatpush1.msra.mxu0 0.0
      %310 = vmatprep.subr.mxu0 0.0
      %311 = vmatpush1.msra.mxu0 0.0
      %312 = vmatprep.subr.mxu0 0.0
      %313 = vmatpush1.msra.mxu0 0.0
      %314 = vmatprep.subr.mxu0 0.0
      %315 = vmatpush1.msra.mxu0 0.0
      %316 = vmatprep.subr.mxu0 0.0
      %317 = vmatpush1.msra.mxu0 0.0
      %318 = vmatprep.subr.mxu0 0.0
      %319 = vmatpush1.msra.mxu0 0.0
      %320 = vmatprep.subr.mxu0 0.0
      %321 = vmatpush1.msra.mxu0 0.0
      %322 = vmatprep.subr.mxu0 0.0
      %323 = vmatpush1.msra.mxu0 0.0
      %324 = vmatprep.subr.mxu0 0.0
      %325 = vmatpush1.msra.mxu0 0.0
      %326 = vmatprep.subr.mxu0 0.0
      %327 = vmatpush1.msra.mxu0 0.0
      %328 = vmatprep.subr.mxu0 0.0
      %329 = vmatpush1.msra.mxu0 0.0
      %330 = vmatprep.subr.mxu0 0.0
      %331 = vmatpush1.msra.mxu0 0.0
      %332 = vmatprep.subr.mxu0 0.0
      %333 = vmatpush1.msra.mxu0 0.0
      %334 = vmatprep.subr.mxu0 0.0
      %335 = vmatpush1.msra.mxu0 0.0
      %336 = vmatprep.subr.mxu0 0.0
      %337 = vmatpush1.msra.mxu0 0.0
      %338 = vmatprep.subr.mxu0 0.0
      %339 = vmatpush1.msra.mxu0 0.0
      %340 = vmatprep.subr.mxu0 0.0
      %341 = vmatpush1.msra.mxu0 0.0
      %342 = vmatprep.subr.mxu0 0.0
      %343 = vmatpush1.msra.mxu0 0.0
      %344 = vmatprep.subr.mxu0 0.0
      %345 = vmatpush1.msra.mxu0 0.0
      %346 = vmatprep.subr.mxu0 0.0
      %347 = vmatpush1.msra.mxu0 0.0
      %348 = vmatprep.subr.mxu0 0.0
      %349 = vmatpush1.msra.mxu0 0.0
      %350 = vmatprep.subr.mxu0 0.0
      %351 = vmatpush1.msra.mxu0 0.0
      %352 = vmatprep.subr.mxu0 0.0
      %353 = vmatpush1.msra.mxu0 0.0
      %354 = vmatprep.subr.mxu0 0.0
      %355 = vmatpush1.msra.mxu0 0.0
      %356 = vmatprep.mubr.f32.mxu0 0.0
      %357 = vmatmul.mubr.f32.gmra.mrb[0].mxu0 %v290
      %v358 = vpop.f32.mrb[0].mxu0
      %v359 = vadd.f32 %v282, %v358
      %v360 = vpop.f32.mrb[0].mxu0
      %v361 = vadd.f32 %v286, %v360
      %362 = vdwg.mxu0
      %363 = vst [vmem:[%s221] sm:$0xff] %v359
      %364 = vst.msk [vmem:[%s221 + $0x8] sm:$0xff] %vm223, %v361
      %p365 = scmp.lt.s32.totalorder %s16, 1
      %s366 = scalar_select %p365, %s16, 1
      %s367 = smul.addr %s366, 2
      %s368 = smul.addr %s367, 8
      %s369 = scalar_lea.vmem %s5, %s368
      // Predicated region
      $region41: #{encoder_block.3} parent=39 // pred_check
        %p370 = pneg %p144
      $region42: #{encoder_block.3} parent=39 // pred_check_branch
        %372 = sbr.rel (%p370) target = $region44
      $region43: #{encoder_block.3} parent=39 // pred_region
        _
      $region44: #{encoder_block.3} parent=39 // pred_fallthru
        _
    $region40: #{encoder_block.3} parent=5 // pred_fallthru
      _
    %p373 = scmp.le.s32.totalorder 2, %s11
    // Predicated region
    $region45: #{encoder_block.3} parent=5 // pred_check
      %p374 = pneg %p373
    $region46: #{encoder_block.3} parent=5 // pred_check_branch
      %376 = sbr.rel (%p374) target = $region48
    $region47: #{encoder_block.3} parent=5 // pred_region
      %s377 = ssub.s32 %s11, 2
      // Predicated region
      $region49: #{encoder_block.3} parent=47 // pred_check
        %p378 = pneg %p150
      $region50: #{encoder_block.3} parent=47 // pred_check_branch
        %380 = sbr.rel (%p378) target = $region52
      $region51: #{encoder_block.3} parent=47 // pred_region
        %p381 = scmp.lt.s32.totalorder %s17, 1
        %s382 = scalar_select %p381, %s17, 1
        %s383 = smul.addr %s382, 2
        %s384 = smul.addr %s383, 8
        %s385 = scalar_lea.vmem %s5, %s384
      $region52: #{encoder_block.3} parent=47 // pred_fallthru
        _
    $region48: #{encoder_block.3} parent=5 // pred_fallthru
      _
  $region6: #{encoder_block.3} parent=0 // loop_footer
    %s15 = sadd.s32 1, %s11
  $region7: #{encoder_block.3} parent=0 // loop_footer_branch
    %10 = sbr.rel target = $region3
  $region8: #{encoder_block.3} parent=0 // loop_exit
    _

// kernel: encoder_block.5
$region0: #{encoder_block.5}
  #allocation0 [shape = 'u32[]', space=smem, size = 0x4, offset = 0x4, fixed_abs, tag = 'smem constant byte address 0x4 - core index']
  #allocation1 [shape = 'u32[144,128]{1,0:T(1,128)}', space=vmem, size = 0x12000, scoped, tag = 'internal scratch']
  %s0 = inlined_call_operand.vmem [shape: f32[16,64], index: 0, kind: input, shape index: {}]
  %s1 = inlined_call_operand.vmem [shape: f32[1,64], index: 1, kind: input, shape index: {}]
  %s2 = inlined_call_operand.vmem [shape: f32[1,64], index: 2, kind: input, shape index: {}]
  %s3 = inlined_call_operand.vmem [shape: f32[64,128], index: 3, kind: input, shape index: {}]
  %s4 = inlined_call_operand.vmem [shape: f32[1,128], index: 4, kind: input, shape index: {}]
  %s5 = inlined_call_operand.vmem [shape: f32[128,64], index: 5, kind: input, shape index: {}]
  %s6 = inlined_call_operand.vmem [shape: f32[1,64], index: 6, kind: input, shape index: {}]
  %s7 = inlined_call_operand.hbm [shape: f32[16,64], index: 7, kind: output, shape index: {}]
  %s8 = sld [smem:[#allocation0]]
  $region61: #{encoder_block.5} parent=0
    _
  %s10 = ssub.s32 1, %s8
  %s11 = scalar_select 0, %s10, %s8
  $region1: #{encoder_block.5} parent=0
    #allocation2 [shape = 'u8[8192]{0}', space=vmem, size = 0x2000, scoped, tag = 'output window, operand 0']
    #allocation3 [shape = 's32[2]{0}', space=sflag, size = 0x8, scoped, tag = 'scoped memory for encoder_block.5']
    %12 = vsyncpa [#allocation3], 0
    %s13 = scalar_lea.sflag [#allocation3], 1
    %14 = vsyncpa %s13, 0
    loop: start=0, step=1, limit=4
    $region2: #{encoder_block.5} parent=1 // loop_pre_header
      _
    $region3: #{encoder_block.5} parent=1 // loop_header
      %s16 = sphi 0, %s20
      %p17 = scmp.ge.s32.totalorder %s16, 4
      %s26 = sphi 0, %s28
      %s29 = sphi 0, %s26
      %s30 = sphi 0, %s29
      %s46 = sphi 0, %s30
      %s50 = sphi 0, %s50
      %s52 = sphi 0, %s50
      %s53 = sphi 0, %s52
      %s67 = sphi 0, %s53
      %s71 = sphi 0, %s71
      %s73 = sphi 0, %s71
      %s74 = sphi 0, %s73
      %s88 = sphi 0, %s74
      %s92 = sphi 0, %s92
      %s94 = sphi 0, %s92
      %s95 = sphi 0, %s94
      %s109 = sphi 0, %s95
      %s113 = sphi 0, %s113
      %s115 = sphi 0, %s113
      %s116 = sphi 0, %s115
      %s130 = sphi 0, %s116
      %s134 = sphi 0, %s134
      %s136 = sphi 0, %s134
      %s137 = sphi 0, %s136
      %s151 = sphi 0, %s137
      %s155 = sphi 0, %s155
      %s157 = sphi 0, %s155
      %s158 = sphi 0, %s157
      %s172 = sphi 0, %s158
      %s178 = sphi 0, %s180
      %s181 = sphi 0, %s178
      %s182 = sphi 0, %s181
      %s198 = sphi 0, %s182
    $region4: #{encoder_block.5} parent=1 // loop_header_branch
      %19 = sbr.rel (%p17) target = $region8
    $region5: #{encoder_block.5} parent=1 // loop_body
      %s21 = ssub.s32 %s16, 1
      %s22 = ssub.s32 %s16, 2
      %s23 = sadd.s32 %s16, 1
      %s24 = ssub.s32 %s16, %s23
      %p25 = scmp.eq.s32.totalorder %s24, 0
      %s27 = sadd.s32 %s26, 1
      %s28 = scalar_select %p25, %s26, %s27
      %p31 = pneg %p25
      %p32 = scmp.eq.s32.totalorder %s16, 1
      %p33 = por %p31, %p32
      %p34 = scmp.ne.s32.totalorder %s26, %s29
      %p35 = scmp.eq.s32.totalorder %s16, 0
      %p36 = por %p34, %p35
      %p37 = scmp.ne.s32.totalorder %s26, %s29
      %p38 = scmp.eq.s32.totalorder %s21, 1
      %p39 = por %p37, %p38
      %p40 = scmp.ne.s32.totalorder %s29, %s30
      %p41 = scmp.eq.s32.totalorder %s21, 0
      %p42 = por %p40, %p41
      %p43 = scmp.ne.s32.totalorder %s29, %s30
      %p44 = scmp.eq.s32.totalorder %s22, 1
      %p45 = por %p43, %p44
      %p47 = scmp.ne.s32.totalorder %s30, %s46
      %p48 = scmp.eq.s32.totalorder %s22, 0
      %p49 = por %p47, %p48
      %s51 = sadd.s32 %s50, 1
      %p54 = scmp.eq.s32.totalorder %s16, 1
      %p55 = scmp.ne.s32.totalorder %s50, %s52
      %p56 = scmp.eq.s32.totalorder %s16, 0
      %p57 = por %p55, %p56
      %p58 = scmp.ne.s32.totalorder %s50, %s52
      %p59 = scmp.eq.s32.totalorder %s21, 1
      %p60 = por %p58, %p59
      %p61 = scmp.ne.s32.totalorder %s52, %s53
      %p62 = scmp.eq.s32.totalorder %s21, 0
      %p63 = por %p61, %p62
      %p64 = scmp.ne.s32.totalorder %s52, %s53
      %p65 = scmp.eq.s32.totalorder %s22, 1
      %p66 = por %p64, %p65
      %p68 = scmp.ne.s32.totalorder %s53, %s67
      %p69 = scmp.eq.s32.totalorder %s22, 0
      %p70 = por %p68, %p69
      %s72 = sadd.s32 %s71, 1
      %p75 = scmp.eq.s32.totalorder %s16, 1
      %p76 = scmp.ne.s32.totalorder %s71, %s73
      %p77 = scmp.eq.s32.totalorder %s16, 0
      %p78 = por %p76, %p77
      %p79 = scmp.ne.s32.totalorder %s71, %s73
      %p80 = scmp.eq.s32.totalorder %s21, 1
      %p81 = por %p79, %p80
      %p82 = scmp.ne.s32.totalorder %s73, %s74
      %p83 = scmp.eq.s32.totalorder %s21, 0
      %p84 = por %p82, %p83
      %p85 = scmp.ne.s32.totalorder %s73, %s74
      %p86 = scmp.eq.s32.totalorder %s22, 1
      %p87 = por %p85, %p86
      %p89 = scmp.ne.s32.totalorder %s74, %s88
      %p90 = scmp.eq.s32.totalorder %s22, 0
      %p91 = por %p89, %p90
      %s93 = sadd.s32 %s92, 1
      %p96 = scmp.eq.s32.totalorder %s16, 1
      %p97 = scmp.ne.s32.totalorder %s92, %s94
      %p98 = scmp.eq.s32.totalorder %s16, 0
      %p99 = por %p97, %p98
      %p100 = scmp.ne.s32.totalorder %s92, %s94
      %p101 = scmp.eq.s32.totalorder %s21, 1
      %p102 = por %p100, %p101
      %p103 = scmp.ne.s32.totalorder %s94, %s95
      %p104 = scmp.eq.s32.totalorder %s21, 0
      %p105 = por %p103, %p104
      %p106 = scmp.ne.s32.totalorder %s94, %s95
      %p107 = scmp.eq.s32.totalorder %s22, 1
      %p108 = por %p106, %p107
      %p110 = scmp.ne.s32.totalorder %s95, %s109
      %p111 = scmp.eq.s32.totalorder %s22, 0
      %p112 = por %p110, %p111
      %s114 = sadd.s32 %s113, 1
      %p117 = scmp.eq.s32.totalorder %s16, 1
      %p118 = scmp.ne.s32.totalorder %s113, %s115
      %p119 = scmp.eq.s32.totalorder %s16, 0
      %p120 = por %p118, %p119
      %p121 = scmp.ne.s32.totalorder %s113, %s115
      %p122 = scmp.eq.s32.totalorder %s21, 1
      %p123 = por %p121, %p122
      %p124 = scmp.ne.s32.totalorder %s115, %s116
      %p125 = scmp.eq.s32.totalorder %s21, 0
      %p126 = por %p124, %p125
      %p127 = scmp.ne.s32.totalorder %s115, %s116
      %p128 = scmp.eq.s32.totalorder %s22, 1
      %p129 = por %p127, %p128
      %p131 = scmp.ne.s32.totalorder %s116, %s130
      %p132 = scmp.eq.s32.totalorder %s22, 0
      %p133 = por %p131, %p132
      %s135 = sadd.s32 %s134, 1
      %p138 = scmp.eq.s32.totalorder %s16, 1
      %p139 = scmp.ne.s32.totalorder %s134, %s136
      %p140 = scmp.eq.s32.totalorder %s16, 0
      %p141 = por %p139, %p140
      %p142 = scmp.ne.s32.totalorder %s134, %s136
      %p143 = scmp.eq.s32.totalorder %s21, 1
      %p144 = por %p142, %p143
      %p145 = scmp.ne.s32.totalorder %s136, %s137
      %p146 = scmp.eq.s32.totalorder %s21, 0
      %p147 = por %p145, %p146
      %p148 = scmp.ne.s32.totalorder %s136, %s137
      %p149 = scmp.eq.s32.totalorder %s22, 1
      %p150 = por %p148, %p149
      %p152 = scmp.ne.s32.totalorder %s137, %s151
      %p153 = scmp.eq.s32.totalorder %s22, 0
      %p154 = por %p152, %p153
      %s156 = sadd.s32 %s155, 1
      %p159 = scmp.eq.s32.totalorder %s16, 1
      %p160 = scmp.ne.s32.totalorder %s155, %s157
      %p161 = scmp.eq.s32.totalorder %s16, 0
      %p162 = por %p160, %p161
      %p163 = scmp.ne.s32.totalorder %s155, %s157
      %p164 = scmp.eq.s32.totalorder %s21, 1
      %p165 = por %p163, %p164
      %p166 = scmp.ne.s32.totalorder %s157, %s158
      %p167 = scmp.eq.s32.totalorder %s21, 0
      %p168 = por %p166, %p167
      %p169 = scmp.ne.s32.totalorder %s157, %s158
      %p170 = scmp.eq.s32.totalorder %s22, 1
      %p171 = por %p169, %p170
      %p173 = scmp.ne.s32.totalorder %s158, %s172
      %p174 = scmp.eq.s32.totalorder %s22, 0
      %p175 = por %p173, %p174
      %s176 = ssub.s32 %s16, %s23
      %p177 = scmp.eq.s32.totalorder %s176, 0
      %s179 = sadd.s32 %s178, 1
      %s180 = scalar_select %p177, %s178, %s179
      %p183 = pneg %p177
      %p184 = scmp.eq.s32.totalorder %s16, 1
      %p185 = por %p183, %p184
      %p186 = scmp.ne.s32.totalorder %s178, %s181
      %p187 = scmp.eq.s32.totalorder %s16, 0
      %p188 = por %p186, %p187
      %p189 = scmp.ne.s32.totalorder %s178, %s181
      %p190 = scmp.eq.s32.totalorder %s21, 1
      %p191 = por %p189, %p190
      %p192 = scmp.ne.s32.totalorder %s181, %s182
      %p193 = scmp.eq.s32.totalorder %s21, 0
      %p194 = por %p192, %p193
      %p195 = scmp.ne.s32.totalorder %s181, %s182
      %p196 = scmp.eq.s32.totalorder %s22, 1
      %p197 = por %p195, %p196
      %p199 = scmp.ne.s32.totalorder %s182, %s198
      %p200 = scmp.eq.s32.totalorder %s22, 0
      %p201 = por %p199, %p200
      %p202 = scmp.le.s32.totalorder 1, %s16
      %p203 = scmp.lt.s32.totalorder %s16, 3
      %p204 = pnand %p202, %p203
      %p205 = pneg %p204
      // Predicated region
      $region9: #{encoder_block.5} parent=5 // pred_check
        _
      $region10: #{encoder_block.5} parent=5 // pred_check_branch
        %207 = sbr.rel (%p204) target = $region12
      $region11: #{encoder_block.5} parent=5 // pred_region
        %s208 = ssub.s32 %s16, 1
        // Predicated region
        $region13: #{encoder_block.5} parent=11 // pred_check
          %p209 = pneg %p63
        $region14: #{encoder_block.5} parent=11 // pred_check_branch
          %211 = sbr.rel (%p209) target = $region16
        $region15: #{encoder_block.5} parent=11 // pred_region
          _
        $region16: #{encoder_block.5} parent=11 // pred_fallthru
          _
        // Predicated region
        $region17: #{encoder_block.5} parent=11 // pred_check
          %p212 = pneg %p84
        $region18: #{encoder_block.5} parent=11 // pred_check_branch
          %214 = sbr.rel (%p212) target = $region20
        $region19: #{encoder_block.5} parent=11 // pred_region
          _
        $region20: #{encoder_block.5} parent=11 // pred_fallthru
          _
        // Predicated region
        $region21: #{encoder_block.5} parent=11 // pred_check
          %p215 = pneg %p105
        $region22: #{encoder_block.5} parent=11 // pred_check_branch
          %217 = sbr.rel (%p215) target = $region24
        $region23: #{encoder_block.5} parent=11 // pred_region
          _
        $region24: #{encoder_block.5} parent=11 // pred_fallthru
          _
        // Predicated region
        $region25: #{encoder_block.5} parent=11 // pred_check
          %p218 = pneg %p126
        $region26: #{encoder_block.5} parent=11 // pred_check_branch
          %220 = sbr.rel (%p218) target = $region28
        $region27: #{encoder_block.5} parent=11 // pred_region
          _
        $region28: #{encoder_block.5} parent=11 // pred_fallthru
          _
        // Predicated region
        $region29: #{encoder_block.5} parent=11 // pred_check
          %p221 = pneg %p147
        $region30: #{encoder_block.5} parent=11 // pred_check_branch
          %223 = sbr.rel (%p221) target = $region32
        $region31: #{encoder_block.5} parent=11 // pred_region
          _
        $region32: #{encoder_block.5} parent=11 // pred_fallthru
          _
        // Predicated region
        $region33: #{encoder_block.5} parent=11 // pred_check
          %p224 = pneg %p168
        $region34: #{encoder_block.5} parent=11 // pred_check_branch
          %226 = sbr.rel (%p224) target = $region36
        $region35: #{encoder_block.5} parent=11 // pred_region
          _
        $region36: #{encoder_block.5} parent=11 // pred_fallthru
          _
      $region12: #{encoder_block.5} parent=5 // pred_fallthru
        _
      %p227 = scmp.lt.s32.totalorder %s16, 2
      // Predicated region
      $region37: #{encoder_block.5} parent=5 // pred_check
        %p228 = pneg %p227
      $region38: #{encoder_block.5} parent=5 // pred_check_branch
        %230 = sbr.rel (%p228) target = $region40
      $region39: #{encoder_block.5} parent=5 // pred_region
        // Predicated region
        $region41: #{encoder_block.5} parent=39 // pred_check
          %p231 = pneg %p36
        $region42: #{encoder_block.5} parent=39 // pred_check_branch
          %233 = sbr.rel (%p231) target = $region44
        $region43: #{encoder_block.5} parent=39 // pred_region
          %p234 = scmp.lt.s32.totalorder %s16, 1
          %s235 = scalar_select %p234, %s16, 1
          %s236 = smul.addr %s235, 8
          %s237 = scalar_lea.vmem %s0, %s236
        $region44: #{encoder_block.5} parent=39 // pred_fallthru
          _
      $region40: #{encoder_block.5} parent=5 // pred_fallthru
        _
      %p238 = scmp.le.s32.totalorder 1, %s16
      %p239 = scmp.lt.s32.totalorder %s16, 3
      %p240 = pnand %p238, %p239
      %p241 = pneg %p240
      // Predicated region
      $region45: #{encoder_block.5} parent=5 // pred_check
        _
      $region46: #{encoder_block.5} parent=5 // pred_check_branch
        %243 = sbr.rel (%p240) target = $region48
      $region47: #{encoder_block.5} parent=5 // pred_region
        %s244 = ssub.s32 %s16, 1
        %p245 = scmp.lt.s32.totalorder %s21, 1
        %s246 = scalar_select %p245, %s21, 1
        %s247 = smul.addr %s246, 8
        %s248 = scalar_lea.vmem %s0, %s247
        %p249 = pneg %p42
        %p250 = pneg %p39
        %p251 = pneg %p63
        %p252 = pneg %p60
        %p253 = pneg %p84
        %p254 = pneg %p81
        %p255 = pneg %p105
        %p256 = pneg %p102
        %p257 = pneg %p126
        %p258 = pneg %p123
        %p259 = pneg %p147
        %p260 = pneg %p144
        %p261 = pneg %p168
        %p262 = pneg %p165
        %p263 = pneg %p194
        %p264 = pneg %p191
        %s265 = sand.u32 %s181, 1
        %s266 = scalar_lea.sflag [#allocation3], %s265
        %s267 = sand.u32 %s181, 1
        %s268 = smul.addr %s267, 8
        %s269 = scalar_lea.vmem [#allocation2], %s268
        %p270 = scmp.lt.s32.totalorder %s21, 1
        %s271 = scalar_select %p270, %s21, 1
        %s272 = smul.addr %s271, 8
        %s273 = scalar_lea.vmem %s0, %s272
        %v274 = vld [vmem:[%s273] sm:$0xff]
        %vm275 = vcmask 523264
        %v276 = vsel %vm275, %v274, 0.0
        %277 = vadd.xlane.f32.xlu0 %v276
        %v278 = vpop.xlane.xlu0 %277
        %v279 = vrcp.pop 64.0
        %v280 = vmul.f32 %v278, %v279
        %v281 = vsub.f32 %v274, %v280
        %v282 = vmul.f32 %v281, %v281
        %v283 = vsel %vm275, %v282, 0.0
        %284 = vadd.xlane.f32.xlu0 %v283
        %v285 = vpop.xlane.xlu0 %284
        %v286 = vmul.f32 %v285, %v279
        %v287 = vld [vmem:[%s1] sm:$0x1]
        %v288 = vrsqrt.pop %v286
        %v289 = vmul.f32 %v286, %v288
        %vm290 = vcmp.eq.f32.partialorder %v286, inf
        %v291 = vsel %vm290, %v286, %v289
        %vm292 = vcmp.eq.f32.partialorder %v286, 0.0
        %v293 = vand.u32 %v286, 2147483648
        %v294 = vsel %vm292, %v293, %v291
        %v295 = vadd.f32 %v294, 1e-06
        %v296 = vrcp.pop %v295
        %v297 = vmul.f32 %v281, %v296
        %v299 = vlaneseq
        %v300 = vshrl.u32 %v299, 7
        %v301 = vsub.s32 0, %v300
        %v302 = vrot.slane %v287, %v301
        %v304 = vmul.f32 %v302, %v297
        %v305 = vld [vmem:[%s2] sm:$0x1]
        %v307 = vlaneseq
        %v308 = vshrl.u32 %v307, 7
        %v309 = vsub.s32 0, %v308
        %v310 = vrot.slane %v305, %v309
        %v312 = vadd.f32 %v304, %v310
        %v313 = vld [vmem:[%s3] sm:$0xff]
        %v314 = vld [vmem:[%s3 + $0x8] sm:$0xff]
        %v315 = vld [vmem:[%s3 + $0x10] sm:$0xff]
        %v316 = vld [vmem:[%s3 + $0x18] sm:$0xff]
        %v317 = vld [vmem:[%s3 + $0x20] sm:$0xff]
        %v318 = vld [vmem:[%s3 + $0x28] sm:$0xff]
        %v319 = vld [vmem:[%s3 + $0x30] sm:$0xff]
        %v320 = vld [vmem:[%s3 + $0x38] sm:$0xff]
        %v321 = vld [vmem:[%s4] sm:$0x1]
        %v323 = vlaneseq
        %v324 = vshrl.u32 %v323, 7
        %v325 = vsub.s32 0, %v324
        %v326 = vrot.slane %v321, %v325
        %v329 = vsel %vm275, %v312, 0
        %331 = vmatprep.subr.mxu0 0.0
        %332 = vmatpush1.msra.mxu0 %v313
        %333 = vmatprep.subr.mxu0 0.0
        %334 = vmatpush1.msra.mxu0 %v314
        %335 = vmatprep.subr.mxu0 0.0
        %336 = vmatpush1.msra.mxu0 %v315
        %337 = vmatprep.subr.mxu0 0.0
        %338 = vmatpush1.msra.mxu0 %v316
        %339 = vmatprep.subr.mxu0 0.0
        %340 = vmatpush1.msra.mxu0 %v317
        %341 = vmatprep.subr.mxu0 0.0
        %342 = vmatpush1.msra.mxu0 %v318
        %343 = vmatprep.subr.mxu0 0.0
        %344 = vmatpush1.msra.mxu0 %v319
        %345 = vmatprep.subr.mxu0 0.0
        %346 = vmatpush1.msra.mxu0 %v320
        %347 = vmatprep.subr.mxu0 0.0
        %348 = vmatpush1.msra.mxu0 0.0
        %349 = vmatprep.subr.mxu0 0.0
        %350 = vmatpush1.msra.mxu0 0.0
        %351 = vmatprep.subr.mxu0 0.0
        %352 = vmatpush1.msra.mxu0 0.0
        %353 = vmatprep.subr.mxu0 0.0
        %354 = vmatpush1.msra.mxu0 0.0
        %355 = vmatprep.subr.mxu0 0.0
        %356 = vmatpush1.msra.mxu0 0.0
        %357 = vmatprep.subr.mxu0 0.0
        %358 = vmatpush1.msra.mxu0 0.0
        %359 = vmatprep.subr.mxu0 0.0
        %360 = vmatpush1.msra.mxu0 0.0
        %361 = vmatprep.subr.mxu0 0.0
        %362 = vmatpush1.msra.mxu0 0.0
        %363 = vmatprep.subr.mxu0 0.0
        %364 = vmatpush1.msra.mxu0 0.0
        %365 = vmatprep.subr.mxu0 0.0
        %366 = vmatpush1.msra.mxu0 0.0
        %367 = vmatprep.subr.mxu0 0.0
        %368 = vmatpush1.msra.mxu0 0.0
        %369 = vmatprep.subr.mxu0 0.0
        %370 = vmatpush1.msra.mxu0 0.0
        %371 = vmatprep.subr.mxu0 0.0
        %372 = vmatpush1.msra.mxu0 0.0
        %373 = vmatprep.subr.mxu0 0.0
        %374 = vmatpush1.msra.mxu0 0.0
        %375 = vmatprep.subr.mxu0 0.0
        %376 = vmatpush1.msra.mxu0 0.0
        %377 = vmatprep.subr.mxu0 0.0
        %378 = vmatpush1.msra.mxu0 0.0
        %379 = vmatprep.subr.mxu0 0.0
        %380 = vmatpush1.msra.mxu0 0.0
        %381 = vmatprep.subr.mxu0 0.0
        %382 = vmatpush1.msra.mxu0 0.0
        %383 = vmatprep.subr.mxu0 0.0
        %384 = vmatpush1.msra.mxu0 0.0
        %385 = vmatprep.subr.mxu0 0.0
        %386 = vmatpush1.msra.mxu0 0.0
        %387 = vmatprep.subr.mxu0 0.0
        %388 = vmatpush1.msra.mxu0 0.0
        %389 = vmatprep.subr.mxu0 0.0
        %390 = vmatpush1.msra.mxu0 0.0
        %391 = vmatprep.subr.mxu0 0.0
        %392 = vmatpush1.msra.mxu0 0.0
        %393 = vmatprep.subr.mxu0 0.0
        %394 = vmatpush1.msra.mxu0 0.0
        %395 = vmatprep.mubr.f32.mxu0 0.0
        %396 = vmatmul.mubr.f32.gmra.mrb[0].mxu0 %v329
        %v397 = vpop.f32.mrb[0].mxu0
        %v398 = vadd.f32 %v326, %v397
        %v399 = vpop.f32.mrb[0].mxu0
        %400 = vdwg.mxu0
        %v401 = vmax.f32 %v398, 0.0
        %v402 = vld [vmem:[%s5] sm:$0xff]
        %v403 = vld [vmem:[%s5 + $0x8] sm:$0xff]
        %v404 = vld [vmem:[%s5 + $0x10] sm:$0xff]
        %v405 = vld [vmem:[%s5 + $0x18] sm:$0xff]
        %v406 = vld [vmem:[%s5 + $0x20] sm:$0xff]
        %v407 = vld [vmem:[%s5 + $0x28] sm:$0xff]
        %v408 = vld [vmem:[%s5 + $0x30] sm:$0xff]
        %v409 = vld [vmem:[%s5 + $0x38] sm:$0xff]
        %v410 = vld [vmem:[%s5 + $0x40] sm:$0xff]
        %v411 = vld [vmem:[%s5 + $0x48] sm:$0xff]
        %v412 = vld [vmem:[%s5 + $0x50] sm:$0xff]
        %v413 = vld [vmem:[%s5 + $0x58] sm:$0xff]
        %v414 = vld [vmem:[%s5 + $0x60] sm:$0xff]
        %v415 = vld [vmem:[%s5 + $0x68] sm:$0xff]
        %v416 = vld [vmem:[%s5 + $0x70] sm:$0xff]
        %v417 = vld [vmem:[%s5 + $0x78] sm:$0xff]
        %v418 = vld [vmem:[%s6] sm:$0x1]
        %v420 = vlaneseq
        %v421 = vshrl.u32 %v420, 7
        %v422 = vsub.s32 0, %v421
        %v423 = vrot.slane %v418, %v422
        %425 = vmatprep.subr.mxu0 0.0
        %426 = vmatpush1.msra.mxu0 %v402
        %427 = vmatprep.subr.mxu0 0.0
        %428 = vmatpush1.msra.mxu0 %v403
        %429 = vmatprep.subr.mxu0 0.0
        %430 = vmatpush1.msra.mxu0 %v404
        %431 = vmatprep.subr.mxu0 0.0
        %432 = vmatpush1.msra.mxu0 %v405
        %433 = vmatprep.subr.mxu0 0.0
        %434 = vmatpush1.msra.mxu0 %v406
        %435 = vmatprep.subr.mxu0 0.0
        %436 = vmatpush1.msra.mxu0 %v407
        %437 = vmatprep.subr.mxu0 0.0
        %438 = vmatpush1.msra.mxu0 %v408
        %439 = vmatprep.subr.mxu0 0.0
        %440 = vmatpush1.msra.mxu0 %v409
        %441 = vmatprep.subr.mxu0 0.0
        %442 = vmatpush1.msra.mxu0 %v410
        %443 = vmatprep.subr.mxu0 0.0
        %444 = vmatpush1.msra.mxu0 %v411
        %445 = vmatprep.subr.mxu0 0.0
        %446 = vmatpush1.msra.mxu0 %v412
        %447 = vmatprep.subr.mxu0 0.0
        %448 = vmatpush1.msra.mxu0 %v413
        %449 = vmatprep.subr.mxu0 0.0
        %450 = vmatpush1.msra.mxu0 %v414
        %451 = vmatprep.subr.mxu0 0.0
        %452 = vmatpush1.msra.mxu0 %v415
        %453 = vmatprep.subr.mxu0 0.0
        %454 = vmatpush1.msra.mxu0 %v416
        %455 = vmatprep.subr.mxu0 0.0
        %456 = vmatpush1.msra.mxu0 %v417
        %457 = vmatprep.subr.mxu0 0.0
        %458 = vmatpush1.msra.mxu0 0.0
        %459 = vmatprep.subr.mxu0 0.0
        %460 = vmatpush1.msra.mxu0 0.0
        %461 = vmatprep.subr.mxu0 0.0
        %462 = vmatpush1.msra.mxu0 0.0
        %463 = vmatprep.subr.mxu0 0.0
        %464 = vmatpush1.msra.mxu0 0.0
        %465 = vmatprep.subr.mxu0 0.0
        %466 = vmatpush1.msra.mxu0 0.0
        %467 = vmatprep.subr.mxu0 0.0
        %468 = vmatpush1.msra.mxu0 0.0
        %469 = vmatprep.subr.mxu0 0.0
        %470 = vmatpush1.msra.mxu0 0.0
        %471 = vmatprep.subr.mxu0 0.0
        %472 = vmatpush1.msra.mxu0 0.0
        %473 = vmatprep.subr.mxu0 0.0
        %474 = vmatpush1.msra.mxu0 0.0
        %475 = vmatprep.subr.mxu0 0.0
        %476 = vmatpush1.msra.mxu0 0.0
        %477 = vmatprep.subr.mxu0 0.0
        %478 = vmatpush1.msra.mxu0 0.0
        %479 = vmatprep.subr.mxu0 0.0
        %480 = vmatpush1.msra.mxu0 0.0
        %481 = vmatprep.subr.mxu0 0.0
        %482 = vmatpush1.msra.mxu0 0.0
        %483 = vmatprep.subr.mxu0 0.0
        %484 = vmatpush1.msra.mxu0 0.0
        %485 = vmatprep.subr.mxu0 0.0
        %486 = vmatpush1.msra.mxu0 0.0
        %487 = vmatprep.subr.mxu0 0.0
        %488 = vmatpush1.msra.mxu0 0.0
        %489 = vmatprep.mubr.f32.mxu0 0.0
        %490 = vmatmul.mubr.f32.gmra.mrb[0].mxu0 %v401
        %v491 = vpop.f32.mrb[0].mxu0
        %v492 = vadd.f32 %v423, %v491
        %v493 = vpop.f32.mrb[0].mxu0
        %494 = vdwg.mxu0
        %v495 = vadd.f32 %v492, %v274
        %496 = vst.msk [vmem:[%s269] sm:$0xff] %vm275, %v495
        %s497 = sand.u32 %s181, 1
        %s498 = scalar_lea.sflag [#allocation3], %s497
        %s499 = sand.u32 %s181, 1
        %s500 = smul.addr %s499, 8
        %s501 = scalar_lea.vmem [#allocation2], %s500
        // Predicated region
        $region49: #{encoder_block.5} parent=47 // pred_check
          %p502 = pneg %p191
        $region50: #{encoder_block.5} parent=47 // pred_check_branch
          %504 = sbr.rel (%p502) target = $region52
        $region51: #{encoder_block.5} parent=47 // pred_region
          %s506 = ssub.s32 128, 128
          %507 = vsyncadd %s498, %s506
          %s508 = smul.addr %s21, 128
          %s509 = scalar_lea.hbm %s7, %s508
          %s511 = sshll.u32 %s501, 4
          %s512 = int_to_ptr.vmem [resolvable:$true] %s511
          %514 = dma.vmem_to_hbm [thread:$0]  %s512, 128, %s509, %s498
        $region52: #{encoder_block.5} parent=47 // pred_fallthru
          _
      $region48: #{encoder_block.5} parent=5 // pred_fallthru
        _
      %p515 = scmp.le.s32.totalorder 2, %s16
      // Predicated region
      $region53: #{encoder_block.5} parent=5 // pred_check
        %p516 = pneg %p515
      $region54: #{encoder_block.5} parent=5 // pred_check_branch
        %518 = sbr.rel (%p516) target = $region56
      $region55: #{encoder_block.5} parent=5 // pred_region
        %s519 = ssub.s32 %s16, 2
        // Predicated region
        $region57: #{encoder_block.5} parent=55 // pred_check
          %p520 = pneg %p197
        $region58: #{encoder_block.5} parent=55 // pred_check_branch
          %522 = sbr.rel (%p520) target = $region60
        $region59: #{encoder_block.5} parent=55 // pred_region
          %s523 = sand.u32 %s182, 1
          %s524 = scalar_lea.sflag [#allocation3], %s523
          %s525 = sand.u32 %s182, 1
          %s526 = smul.addr %s525, 8
          %s527 = scalar_lea.vmem [#allocation2], %s526
          %528 = dma.done %s524, 128
        $region60: #{encoder_block.5} parent=55 // pred_fallthru
          _
      $region56: #{encoder_block.5} parent=5 // pred_fallthru
        _
    $region6: #{encoder_block.5} parent=1 // loop_footer
      %s20 = sadd.s32 1, %s16
    $region7: #{encoder_block.5} parent=1 // loop_footer_branch
      %15 = sbr.rel target = $region3
    $region8: #{encoder_block.5} parent=1 // loop_exit
      _
    %529 = vsyncpa [#allocation3], 1
    %s530 = scalar_lea.sflag [#allocation3], 1
    %531 = vsyncpa %s530, 1

// kernel: encoder_block.4
$region0: #{encoder_block.4}
  #allocation0 [shape = 'u32[]', space=smem, size = 0x4, offset = 0x4, fixed_abs, tag = 'smem constant byte address 0x4 - core index']
  #allocation1 [shape = 'u32[144,128]{1,0:T(1,128)}', space=vmem, size = 0x12000, scoped, tag = 'internal scratch']
  %s0 = inlined_call_operand.vmem [shape: f32[2,8,192], index: 0, kind: input, shape index: {}]
  %s1 = inlined_call_operand.vmem [shape: f32[2,1,8], index: 1, kind: input, shape index: {}]
  %s2 = inlined_call_operand.vmem [shape: f32[64,64], index: 2, kind: input, shape index: {}]
  %s3 = inlined_call_operand.vmem [shape: f32[1,64], index: 3, kind: input, shape index: {}]
  %s4 = inlined_call_operand.vmem [shape: f32[2,8,64], index: 4, kind: input, shape index: {}]
  %s5 = inlined_call_operand.vmem [shape: f32[2,8,64], index: 5, kind: output, shape index: {}]
  %s6 = sld [smem:[#allocation0]]
  $region53: #{encoder_block.4} parent=0
    _
  %s8 = ssub.s32 1, %s6
  %s9 = scalar_select 0, %s8, %s6
  loop: start=0, step=1, limit=4
  $region2: #{encoder_block.4} parent=0 // loop_pre_header
    _
  $region3: #{encoder_block.4} parent=0 // loop_header
    %s11 = sphi 0, %s15
    %p12 = scmp.ge.s32.totalorder %s11, 4
    %s21 = sphi 0, %s23
    %s24 = sphi 0, %s21
    %s25 = sphi 0, %s24
    %s41 = sphi 0, %s25
    %s47 = sphi 0, %s49
    %s50 = sphi 0, %s47
    %s51 = sphi 0, %s50
    %s67 = sphi 0, %s51
    %s71 = sphi 0, %s71
    %s73 = sphi 0, %s71
    %s74 = sphi 0, %s73
    %s88 = sphi 0, %s74
    %s92 = sphi 0, %s92
    %s94 = sphi 0, %s92
    %s95 = sphi 0, %s94
    %s109 = sphi 0, %s95
    %s115 = sphi 0, %s117
    %s118 = sphi 0, %s115
    %s119 = sphi 0, %s118
    %s135 = sphi 0, %s119
    %s141 = sphi 0, %s143
    %s144 = sphi 0, %s141
    %s145 = sphi 0, %s144
    %s161 = sphi 0, %s145
  $region4: #{encoder_block.4} parent=0 // loop_header_branch
    %14 = sbr.rel (%p12) target = $region8
  $region5: #{encoder_block.4} parent=0 // loop_body
    %s16 = ssub.s32 %s11, 1
    %s17 = ssub.s32 %s11, 2
    %s18 = sadd.s32 %s11, 1
    %s19 = ssub.s32 %s11, %s18
    %p20 = scmp.eq.s32.totalorder %s19, 0
    %s22 = sadd.s32 %s21, 1
    %s23 = scalar_select %p20, %s21, %s22
    %p26 = pneg %p20
    %p27 = scmp.eq.s32.totalorder %s11, 1
    %p28 = por %p26, %p27
    %p29 = scmp.ne.s32.totalorder %s21, %s24
    %p30 = scmp.eq.s32.totalorder %s11, 0
    %p31 = por %p29, %p30
    %p32 = scmp.ne.s32.totalorder %s21, %s24
    %p33 = scmp.eq.s32.totalorder %s16, 1
    %p34 = por %p32, %p33
    %p35 = scmp.ne.s32.totalorder %s24, %s25
    %p36 = scmp.eq.s32.totalorder %s16, 0
    %p37 = por %p35, %p36
    %p38 = scmp.ne.s32.totalorder %s24, %s25
    %p39 = scmp.eq.s32.totalorder %s17, 1
    %p40 = por %p38, %p39
    %p42 = scmp.ne.s32.totalorder %s25, %s41
    %p43 = scmp.eq.s32.totalorder %s17, 0
    %p44 = por %p42, %p43
    %s45 = ssub.s32 %s11, %s18
    %p46 = scmp.eq.s32.totalorder %s45, 0
    %s48 = sadd.s32 %s47, 1
    %s49 = scalar_select %p46, %s47, %s48
    %p52 = pneg %p46
    %p53 = scmp.eq.s32.totalorder %s11, 1
    %p54 = por %p52, %p53
    %p55 = scmp.ne.s32.totalorder %s47, %s50
    %p56 = scmp.eq.s32.totalorder %s11, 0
    %p57 = por %p55, %p56
    %p58 = scmp.ne.s32.totalorder %s47, %s50
    %p59 = scmp.eq.s32.totalorder %s16, 1
    %p60 = por %p58, %p59
    %p61 = scmp.ne.s32.totalorder %s50, %s51
    %p62 = scmp.eq.s32.totalorder %s16, 0
    %p63 = por %p61, %p62
    %p64 = scmp.ne.s32.totalorder %s50, %s51
    %p65 = scmp.eq.s32.totalorder %s17, 1
    %p66 = por %p64, %p65
    %p68 = scmp.ne.s32.totalorder %s51, %s67
    %p69 = scmp.eq.s32.totalorder %s17, 0
    %p70 = por %p68, %p69
    %s72 = sadd.s32 %s71, 1
    %p75 = scmp.eq.s32.totalorder %s11, 1
    %p76 = scmp.ne.s32.totalorder %s71, %s73
    %p77 = scmp.eq.s32.totalorder %s11, 0
    %p78 = por %p76, %p77
    %p79 = scmp.ne.s32.totalorder %s71, %s73
    %p80 = scmp.eq.s32.totalorder %s16, 1
    %p81 = por %p79, %p80
    %p82 = scmp.ne.s32.totalorder %s73, %s74
    %p83 = scmp.eq.s32.totalorder %s16, 0
    %p84 = por %p82, %p83
    %p85 = scmp.ne.s32.totalorder %s73, %s74
    %p86 = scmp.eq.s32.totalorder %s17, 1
    %p87 = por %p85, %p86
    %p89 = scmp.ne.s32.totalorder %s74, %s88
    %p90 = scmp.eq.s32.totalorder %s17, 0
    %p91 = por %p89, %p90
    %s93 = sadd.s32 %s92, 1
    %p96 = scmp.eq.s32.totalorder %s11, 1
    %p97 = scmp.ne.s32.totalorder %s92, %s94
    %p98 = scmp.eq.s32.totalorder %s11, 0
    %p99 = por %p97, %p98
    %p100 = scmp.ne.s32.totalorder %s92, %s94
    %p101 = scmp.eq.s32.totalorder %s16, 1
    %p102 = por %p100, %p101
    %p103 = scmp.ne.s32.totalorder %s94, %s95
    %p104 = scmp.eq.s32.totalorder %s16, 0
    %p105 = por %p103, %p104
    %p106 = scmp.ne.s32.totalorder %s94, %s95
    %p107 = scmp.eq.s32.totalorder %s17, 1
    %p108 = por %p106, %p107
    %p110 = scmp.ne.s32.totalorder %s95, %s109
    %p111 = scmp.eq.s32.totalorder %s17, 0
    %p112 = por %p110, %p111
    %s113 = ssub.s32 %s11, %s18
    %p114 = scmp.eq.s32.totalorder %s113, 0
    %s116 = sadd.s32 %s115, 1
    %s117 = scalar_select %p114, %s115, %s116
    %p120 = pneg %p114
    %p121 = scmp.eq.s32.totalorder %s11, 1
    %p122 = por %p120, %p121
    %p123 = scmp.ne.s32.totalorder %s115, %s118
    %p124 = scmp.eq.s32.totalorder %s11, 0
    %p125 = por %p123, %p124
    %p126 = scmp.ne.s32.totalorder %s115, %s118
    %p127 = scmp.eq.s32.totalorder %s16, 1
    %p128 = por %p126, %p127
    %p129 = scmp.ne.s32.totalorder %s118, %s119
    %p130 = scmp.eq.s32.totalorder %s16, 0
    %p131 = por %p129, %p130
    %p132 = scmp.ne.s32.totalorder %s118, %s119
    %p133 = scmp.eq.s32.totalorder %s17, 1
    %p134 = por %p132, %p133
    %p136 = scmp.ne.s32.totalorder %s119, %s135
    %p137 = scmp.eq.s32.totalorder %s17, 0
    %p138 = por %p136, %p137
    %s139 = ssub.s32 %s11, %s18
    %p140 = scmp.eq.s32.totalorder %s139, 0
    %s142 = sadd.s32 %s141, 1
    %s143 = scalar_select %p140, %s141, %s142
    %p146 = pneg %p140
    %p147 = scmp.eq.s32.totalorder %s11, 1
    %p148 = por %p146, %p147
    %p149 = scmp.ne.s32.totalorder %s141, %s144
    %p150 = scmp.eq.s32.totalorder %s11, 0
    %p151 = por %p149, %p150
    %p152 = scmp.ne.s32.totalorder %s141, %s144
    %p153 = scmp.eq.s32.totalorder %s16, 1
    %p154 = por %p152, %p153
    %p155 = scmp.ne.s32.totalorder %s144, %s145
    %p156 = scmp.eq.s32.totalorder %s16, 0
    %p157 = por %p155, %p156
    %p158 = scmp.ne.s32.totalorder %s144, %s145
    %p159 = scmp.eq.s32.totalorder %s17, 1
    %p160 = por %p158, %p159
    %p162 = scmp.ne.s32.totalorder %s145, %s161
    %p163 = scmp.eq.s32.totalorder %s17, 0
    %p164 = por %p162, %p163
    %p165 = scmp.le.s32.totalorder 1, %s11
    %p166 = scmp.lt.s32.totalorder %s11, 3
    %p167 = pnand %p165, %p166
    %p168 = pneg %p167
    // Predicated region
    $region9: #{encoder_block.4} parent=5 // pred_check
      _
    $region10: #{encoder_block.4} parent=5 // pred_check_branch
      %170 = sbr.rel (%p167) target = $region12
    $region11: #{encoder_block.4} parent=5 // pred_region
      %s171 = ssub.s32 %s11, 1
      // Predicated region
      $region13: #{encoder_block.4} parent=11 // pred_check
        %p172 = pneg %p84
      $region14: #{encoder_block.4} parent=11 // pred_check_branch
        %174 = sbr.rel (%p172) target = $region16
      $region15: #{encoder_block.4} parent=11 // pred_region
        _
      $region16: #{encoder_block.4} parent=11 // pred_fallthru
        _
      // Predicated region
      $region17: #{encoder_block.4} parent=11 // pred_check
        %p175 = pneg %p105
      $region18: #{encoder_block.4} parent=11 // pred_check_branch
        %177 = sbr.rel (%p175) target = $region20
      $region19: #{encoder_block.4} parent=11 // pred_region
        _
      $region20: #{encoder_block.4} parent=11 // pred_fallthru
        _
    $region12: #{encoder_block.4} parent=5 // pred_fallthru
      _
    %p178 = scmp.lt.s32.totalorder %s11, 2
    // Predicated region
    $region21: #{encoder_block.4} parent=5 // pred_check
      %p179 = pneg %p178
    $region22: #{encoder_block.4} parent=5 // pred_check_branch
      %181 = sbr.rel (%p179) target = $region24
    $region23: #{encoder_block.4} parent=5 // pred_region
      // Predicated region
      $region25: #{encoder_block.4} parent=23 // pred_check
        %p182 = pneg %p31
      $region26: #{encoder_block.4} parent=23 // pred_check_branch
        %184 = sbr.rel (%p182) target = $region28
      $region27: #{encoder_block.4} parent=23 // pred_region
        %p185 = scmp.lt.s32.totalorder %s11, 1
        %s186 = scalar_select %p185, %s11, 1
        %s187 = smul.addr %s186, 2
        %s188 = smul.addr %s187, 8
        %s189 = scalar_lea.vmem %s0, %s188
      $region28: #{encoder_block.4} parent=23 // pred_fallthru
        _
      // Predicated region
      $region29: #{encoder_block.4} parent=23 // pred_check
        %p190 = pneg %p57
      $region30: #{encoder_block.4} parent=23 // pred_check_branch
        %192 = sbr.rel (%p190) target = $region32
      $region31: #{encoder_block.4} parent=23 // pred_region
        %p193 = scmp.lt.s32.totalorder %s11, 1
        %s194 = scalar_select %p193, %s11, 1
        %s195 = scalar_lea.vmem %s1, %s194
      $region32: #{encoder_block.4} parent=23 // pred_fallthru
        _
      // Predicated region
      $region33: #{encoder_block.4} parent=23 // pred_check
        %p196 = pneg %p125
      $region34: #{encoder_block.4} parent=23 // pred_check_branch
        %198 = sbr.rel (%p196) target = $region36
      $region35: #{encoder_block.4} parent=23 // pred_region
        %p199 = scmp.lt.s32.totalorder %s11, 1
        %s200 = scalar_select %p199, %s11, 1
        %s201 = smul.addr %s200, 8
        %s202 = scalar_lea.vmem %s4, %s201
      $region36: #{encoder_block.4} parent=23 // pred_fallthru
        _
    $region24: #{encoder_block.4} parent=5 // pred_fallthru
      _
    %p203 = scmp.le.s32.totalorder 1, %s11
    %p204 = scmp.lt.s32.totalorder %s11, 3
    %p205 = pnand %p203, %p204
    %p206 = pneg %p205
    // Predicated region
    $region37: #{encoder_block.4} parent=5 // pred_check
      _
    $region38: #{encoder_block.4} parent=5 // pred_check_branch
      %208 = sbr.rel (%p205) target = $region40
    $region39: #{encoder_block.4} parent=5 // pred_region
      %s209 = ssub.s32 %s11, 1
      %p210 = scmp.lt.s32.totalorder %s16, 1
      %s211 = scalar_select %p210, %s16, 1
      %s212 = smul.addr %s211, 2
      %s213 = smul.addr %s212, 8
      %s214 = scalar_lea.vmem %s0, %s213
      %p215 = pneg %p37
      %p216 = pneg %p34
      %p217 = scmp.lt.s32.totalorder %s16, 1
      %s218 = scalar_select %p217, %s16, 1
      %s219 = scalar_lea.vmem %s1, %s218
      %p220 = pneg %p63
      %p221 = pneg %p60
      %p222 = pneg %p84
      %p223 = pneg %p81
      %p224 = pneg %p105
      %p225 = pneg %p102
      %p226 = scmp.lt.s32.totalorder %s16, 1
      %s227 = scalar_select %p226, %s16, 1
      %s228 = smul.addr %s227, 8
      %s229 = scalar_lea.vmem %s4, %s228
      %p230 = pneg %p131
      %p231 = pneg %p128
      %p232 = pneg %p157
      %p233 = pneg %p154
      %p234 = scmp.lt.s32.totalorder %s16, 1
      %s235 = scalar_select %p234, %s16, 1
      %s236 = smul.addr %s235, 8
      %s237 = scalar_lea.vmem %s5, %s236
      %p238 = scmp.lt.s32.totalorder %s16, 1
      %s239 = scalar_select %p238, %s16, 1
      %s240 = smul.addr %s239, 2
      %s241 = smul.addr %s240, 8
      %s242 = scalar_lea.vmem %s0, %s241
      %p243 = scmp.lt.s32.totalorder %s16, 1
      %s244 = scalar_select %p243, %s16, 1
      %s245 = scalar_lea.vmem %s1, %s244
      %p246 = scmp.lt.s32.totalorder %s16, 1
      %s247 = scalar_select %p246, %s16, 1
      %s248 = smul.addr %s247, 8
      %s249 = scalar_lea.vmem %s4, %s248
      %p250 = scmp.lt.s32.totalorder %s16, 1
      %s251 = scalar_select %p250, %s16, 1
      %s252 = smul.addr %s251, 8
      %s253 = scalar_lea.vmem %s5, %s252
      %v254 = vld [vmem:[%s242] sm:$0xff]
      %v255 = vld [vmem:[%s242 + $0x8] sm:$0xff]
      %v256 = vld [vmem:[%s245] sm:$0x1]
      %vm257 = vcmp.eq.f32.partialorder %v256, 0.0
      %v258 = vsel %vm257, -1e+09, 0.0
      %260 = vrot.lane.b32.xlu0 %v254, 64
      %v261 = vpop.permute.xlu0 %260
      %vm262 = vcmask 130048
      %v263 = vsel %vm262, %v254, 0
      %v265 = vsel %vm262, %v261, 0
      %267 = vmatprep.subr.mxu0 0.0
      %268 = vmatpush1.xpose.msra.mxu0 %v265
      %269 = vmatprep.subr.mxu0 0.0
      %270 = vmatpush1.xpose.msra.mxu0 0.0
      %271 = vmatprep.subr.mxu0 0.0
      %272 = vmatpush1.xpose.msra.mxu0 0.0
      %273 = vmatprep.subr.mxu0 0.0
      %274 = vmatpush1.xpose.msra.mxu0 0.0
      %275 = vmatprep.subr.mxu0 0.0
      %276 = vmatpush1.xpose.msra.mxu0 0.0
      %277 = vmatprep.subr.mxu0 0.0
      %278 = vmatpush1.xpose.msra.mxu0 0.0
      %279 = vmatprep.subr.mxu0 0.0
      %280 = vmatpush1.xpose.msra.mxu0 0.0
      %281 = vmatprep.subr.mxu0 0.0
      %282 = vmatpush1.xpose.msra.mxu0 0.0
      %283 = vmatprep.subr.mxu0 0.0
      %284 = vmatpush1.xpose.msra.mxu0 0.0
      %285 = vmatprep.subr.mxu0 0.0
      %286 = vmatpush1.xpose.msra.mxu0 0.0
      %287 = vmatprep.subr.mxu0 0.0
      %288 = vmatpush1.xpose.msra.mxu0 0.0
      %289 = vmatprep.subr.mxu0 0.0
      %290 = vmatpush1.xpose.msra.mxu0 0.0
      %291 = vmatprep.subr.mxu0 0.0
      %292 = vmatpush1.xpose.msra.mxu0 0.0
      %293 = vmatprep.subr.mxu0 0.0
      %294 = vmatpush1.xpose.msra.mxu0 0.0
      %295 = vmatprep.subr.mxu0 0.0
      %296 = vmatpush1.xpose.msra.mxu0 0.0
      %297 = vmatprep.subr.mxu0 0.0
      %298 = vmatpush1.xpose.msra.mxu0 0.0
      %299 = vmatprep.subr.mxu0 0.0
      %300 = vmatpush1.xpose.msra.mxu0 0.0
      %301 = vmatprep.subr.mxu0 0.0
      %302 = vmatpush1.xpose.msra.mxu0 0.0
      %303 = vmatprep.subr.mxu0 0.0
      %304 = vmatpush1.xpose.msra.mxu0 0.0
      %305 = vmatprep.subr.mxu0 0.0
      %306 = vmatpush1.xpose.msra.mxu0 0.0
      %307 = vmatprep.subr.mxu0 0.0
      %308 = vmatpush1.xpose.msra.mxu0 0.0
      %309 = vmatprep.subr.mxu0 0.0
      %310 = vmatpush1.xpose.msra.mxu0 0.0
      %311 = vmatprep.subr.mxu0 0.0
      %312 = vmatpush1.xpose.msra.mxu0 0.0
      %313 = vmatprep.subr.mxu0 0.0
      %314 = vmatpush1.xpose.msra.mxu0 0.0
      %315 = vmatprep.subr.mxu0 0.0
      %316 = vmatpush1.xpose.msra.mxu0 0.0
      %317 = vmatprep.subr.mxu0 0.0
      %318 = vmatpush1.xpose.msra.mxu0 0.0
      %319 = vmatprep.subr.mxu0 0.0
      %320 = vmatpush1.xpose.msra.mxu0 0.0
      %321 = vmatprep.subr.mxu0 0.0
      %322 = vmatpush1.xpose.msra.mxu0 0.0
      %323 = vmatprep.subr.mxu0 0.0
      %324 = vmatpush1.xpose.msra.mxu0 0.0
      %325 = vmatprep.subr.mxu0 0.0
      %326 = vmatpush1.xpose.msra.mxu0 0.0
      %327 = vmatprep.subr.mxu0 0.0
      %328 = vmatpush1.xpose.msra.mxu0 0.0
      %329 = vmatprep.subr.mxu0 0.0
      %330 = vmatpush1.xpose.msra.mxu0 0.0
      %331 = vmatprep.mubr.f32.mxu0 0.0
      %332 = vmatmul.mubr.f32.gmra.mrb[0].mxu0 %v263
      %v333 = vpop.f32.mrb[0].mxu0
      %v334 = vadd.f32 0.0, %v333
      %v335 = vpop.f32.mrb[0].mxu0
      %336 = vdwg.mxu0
      %v337 = vmul.f32 %v334, 0.25
      %v339 = vlaneseq
      %v340 = vshrl.u32 %v339, 7
      %v341 = vsub.s32 0, %v340
      %v342 = vrot.slane %v258, %v341
      %v344 = vadd.f32 %v337, %v342
      %vm345 = vcmask 64512
      %v346 = vsel %vm345, %v344, -inf
      %347 = vmax.xlane.f32.xlu0 %v346
      %v348 = vpop.xlane.xlu0 %347
      %v349 = vsub.f32 %v344, %v348
      %v350 = vmul.f32 %v349, 1.442695
      %v351 = vpow.pop %v350
      %v352 = vsel %vm345, %v351, 0.0
      %353 = vadd.xlane.f32.xlu0 %v352
      %v354 = vpop.xlane.xlu0 %353
      %v355 = vrcp.pop %v354
      %v356 = vmul.f32 %v351, %v355
      %v358 = vsel %vm345, %v356, 0
      %360 = vmatprep.subr.mxu0 0.0
      %361 = vmatpush1.msra.mxu0 %v255
      %362 = vmatprep.subr.mxu0 0.0
      %363 = vmatpush1.msra.mxu0 0.0
      %364 = vmatprep.subr.mxu0 0.0
      %365 = vmatpush1.msra.mxu0 0.0
      %366 = vmatprep.subr.mxu0 0.0
      %367 = vmatpush1.msra.mxu0 0.0
      %368 = vmatprep.subr.mxu0 0.0
      %369 = vmatpush1.msra.mxu0 0.0
      %370 = vmatprep.subr.mxu0 0.0
      %371 = vmatpush1.msra.mxu0 0.0
      %372 = vmatprep.subr.mxu0 0.0
      %373 = vmatpush1.msra.mxu0 0.0
      %374 = vmatprep.subr.mxu0 0.0
      %375 = vmatpush1.msra.mxu0 0.0
      %376 = vmatprep.subr.mxu0 0.0
      %377 = vmatpush1.msra.mxu0 0.0
      %378 = vmatprep.subr.mxu0 0.0
      %379 = vmatpush1.msra.mxu0 0.0
      %380 = vmatprep.subr.mxu0 0.0
      %381 = vmatpush1.msra.mxu0 0.0
      %382 = vmatprep.subr.mxu0 0.0
      %383 = vmatpush1.msra.mxu0 0.0
      %384 = vmatprep.subr.mxu0 0.0
      %385 = vmatpush1.msra.mxu0 0.0
      %386 = vmatprep.subr.mxu0 0.0
      %387 = vmatpush1.msra.mxu0 0.0
      %388 = vmatprep.subr.mxu0 0.0
      %389 = vmatpush1.msra.mxu0 0.0
      %390 = vmatprep.subr.mxu0 0.0
      %391 = vmatpush1.msra.mxu0 0.0
      %392 = vmatprep.subr.mxu0 0.0
      %393 = vmatpush1.msra.mxu0 0.0
      %394 = vmatprep.subr.mxu0 0.0
      %395 = vmatpush1.msra.mxu0 0.0
      %396 = vmatprep.subr.mxu0 0.0
      %397 = vmatpush1.msra.mxu0 0.0
      %398 = vmatprep.subr.mxu0 0.0
      %399 = vmatpush1.msra.mxu0 0.0
      %400 = vmatprep.subr.mxu0 0.0
      %401 = vmatpush1.msra.mxu0 0.0
      %402 = vmatprep.subr.mxu0 0.0
      %403 = vmatpush1.msra.mxu0 0.0
      %404 = vmatprep.subr.mxu0 0.0
      %405 = vmatpush1.msra.mxu0 0.0
      %406 = vmatprep.subr.mxu0 0.0
      %407 = vmatpush1.msra.mxu0 0.0
      %408 = vmatprep.subr.mxu0 0.0
      %409 = vmatpush1.msra.mxu0 0.0
      %410 = vmatprep.subr.mxu0 0.0
      %411 = vmatpush1.msra.mxu0 0.0
      %412 = vmatprep.subr.mxu0 0.0
      %413 = vmatpush1.msra.mxu0 0.0
      %414 = vmatprep.subr.mxu0 0.0
      %415 = vmatpush1.msra.mxu0 0.0
      %416 = vmatprep.subr.mxu0 0.0
      %417 = vmatpush1.msra.mxu0 0.0
      %418 = vmatprep.subr.mxu0 0.0
      %419 = vmatpush1.msra.mxu0 0.0
      %420 = vmatprep.subr.mxu0 0.0
      %421 = vmatpush1.msra.mxu0 0.0
      %422 = vmatprep.subr.mxu0 0.0
      %423 = vmatpush1.msra.mxu0 0.0
      %424 = vmatprep.mubr.f32.mxu0 0.0
      %425 = vmatmul.mubr.f32.gmra.mrb[0].mxu0 %v358
      %v426 = vpop.f32.mrb[0].mxu0
      %v427 = vadd.f32 0.0, %v426
      %v428 = vpop.f32.mrb[0].mxu0
      %429 = vdwg.mxu0
      %430 = vrot.lane.b32.xlu0 %v254, 112
      %v431 = vpop.permute.xlu0 %430
      %432 = vrot.lane.b32.xlu0 %v254, 48
      %v433 = vpop.permute.xlu0 %432
      %v434 = vsel %vm262, %v431, 0
      %v436 = vsel %vm262, %v433, 0
      %438 = vmatprep.subr.mxu0 0.0
      %439 = vmatpush1.xpose.msra.mxu0 %v436
      %440 = vmatprep.subr.mxu0 0.0
      %441 = vmatpush1.xpose.msra.mxu0 0.0
      %442 = vmatprep.subr.mxu0 0.0
      %443 = vmatpush1.xpose.msra.mxu0 0.0
      %444 = vmatprep.subr.mxu0 0.0
      %445 = vmatpush1.xpose.msra.mxu0 0.0
      %446 = vmatprep.subr.mxu0 0.0
      %447 = vmatpush1.xpose.msra.mxu0 0.0
      %448 = vmatprep.subr.mxu0 0.0
      %449 = vmatpush1.xpose.msra.mxu0 0.0
      %450 = vmatprep.subr.mxu0 0.0
      %451 = vmatpush1.xpose.msra.mxu0 0.0
      %452 = vmatprep.subr.mxu0 0.0
      %453 = vmatpush1.xpose.msra.mxu0 0.0
      %454 = vmatprep.subr.mxu0 0.0
      %455 = vmatpush1.xpose.msra.mxu0 0.0
      %456 = vmatprep.subr.mxu0 0.0
      %457 = vmatpush1.xpose.msra.mxu0 0.0
      %458 = vmatprep.subr.mxu0 0.0
      %459 = vmatpush1.xpose.msra.mxu0 0.0
      %460 = vmatprep.subr.mxu0 0.0
      %461 = vmatpush1.xpose.msra.mxu0 0.0
      %462 = vmatprep.subr.mxu0 0.0
      %463 = vmatpush1.xpose.msra.mxu0 0.0
      %464 = vmatprep.subr.mxu0 0.0
      %465 = vmatpush1.xpose.msra.mxu0 0.0
      %466 = vmatprep.subr.mxu0 0.0
      %467 = vmatpush1.xpose.msra.mxu0 0.0
      %468 = vmatprep.subr.mxu0 0.0
      %469 = vmatpush1.xpose.msra.mxu0 0.0
      %470 = vmatprep.subr.mxu0 0.0
      %471 = vmatpush1.xpose.msra.mxu0 0.0
      %472 = vmatprep.subr.mxu0 0.0
      %473 = vmatpush1.xpose.msra.mxu0 0.0
      %474 = vmatprep.subr.mxu0 0.0
      %475 = vmatpush1.xpose.msra.mxu0 0.0
      %476 = vmatprep.subr.mxu0 0.0
      %477 = vmatpush1.xpose.msra.mxu0 0.0
      %478 = vmatprep.subr.mxu0 0.0
      %479 = vmatpush1.xpose.msra.mxu0 0.0
      %480 = vmatprep.subr.mxu0 0.0
      %481 = vmatpush1.xpose.msra.mxu0 0.0
      %482 = vmatprep.subr.mxu0 0.0
      %483 = vmatpush1.xpose.msra.mxu0 0.0
      %484 = vmatprep.subr.mxu0 0.0
      %485 = vmatpush1.xpose.msra.mxu0 0.0
      %486 = vmatprep.subr.mxu0 0.0
      %487 = vmatpush1.xpose.msra.mxu0 0.0
      %488 = vmatprep.subr.mxu0 0.0
      %489 = vmatpush1.xpose.msra.mxu0 0.0
      %490 = vmatprep.subr.mxu0 0.0
      %491 = vmatpush1.xpose.msra.mxu0 0.0
      %492 = vmatprep.subr.mxu0 0.0
      %493 = vmatpush1.xpose.msra.mxu0 0.0
      %494 = vmatprep.subr.mxu0 0.0
      %495 = vmatpush1.xpose.msra.mxu0 0.0
      %496 = vmatprep.subr.mxu0 0.0
      %497 = vmatpush1.xpose.msra.mxu0 0.0
      %498 = vmatprep.subr.mxu0 0.0
      %499 = vmatpush1.xpose.msra.mxu0 0.0
      %500 = vmatprep.subr.mxu0 0.0
      %501 = vmatpush1.xpose.msra.mxu0 0.0
      %502 = vmatprep.mubr.f32.mxu0 0.0
      %503 = vmatmul.mubr.f32.gmra.mrb[0].mxu0 %v434
      %v504 = vpop.f32.mrb[0].mxu0
      %v505 = vadd.f32 0.0, %v504
      %v506 = vpop.f32.mrb[0].mxu0
      %507 = vdwg.mxu0
      %v508 = vmul.f32 %v505, 0.25
      %v509 = vadd.f32 %v508, %v342
      %v510 = vsel %vm345, %v509, -inf
      %511 = vmax.xlane.f32.xlu0 %v510
      %v512 = vpop.xlane.xlu0 %511
      %v513 = vsub.f32 %v509, %v512
      %v514 = vmul.f32 %v513, 1.442695
      %v515 = vpow.pop %v514
      %v516 = vsel %vm345, %v515, 0.0
      %517 = vadd.xlane.f32.xlu0 %v516
      %v518 = vpop.xlane.xlu0 %517
      %v519 = vrcp.pop %v518
      %v520 = vmul.f32 %v515, %v519
      %522 = vrot.lane.b32.xlu0 %v255, 112
      %v523 = vpop.permute.xlu0 %522
      %v526 = vsel %vm345, %v520, 0
      %528 = vmatprep.subr.mxu0 0.0
      %529 = vmatpush1.msra.mxu0 %v523
      %530 = vmatprep.subr.mxu0 0.0
      %531 = vmatpush1.msra.mxu0 0.0
      %532 = vmatprep.subr.mxu0 0.0
      %533 = vmatpush1.msra.mxu0 0.0
      %534 = vmatprep.subr.mxu0 0.0
      %535 = vmatpush1.msra.mxu0 0.0
      %536 = vmatprep.subr.mxu0 0.0
      %537 = vmatpush1.msra.mxu0 0.0
      %538 = vmatprep.subr.mxu0 0.0
      %539 = vmatpush1.msra.mxu0 0.0
      %540 = vmatprep.subr.mxu0 0.0
      %541 = vmatpush1.msra.mxu0 0.0
      %542 = vmatprep.subr.mxu0 0.0
      %543 = vmatpush1.msra.mxu0 0.0
      %544 = vmatprep.subr.mxu0 0.0
      %545 = vmatpush1.msra.mxu0 0.0
      %546 = vmatprep.subr.mxu0 0.0
      %547 = vmatpush1.msra.mxu0 0.0
      %548 = vmatprep.subr.mxu0 0.0
      %549 = vmatpush1.msra.mxu0 0.0
      %550 = vmatprep.subr.mxu0 0.0
      %551 = vmatpush1.msra.mxu0 0.0
      %552 = vmatprep.subr.mxu0 0.0
      %553 = vmatpush1.msra.mxu0 0.0
      %554 = vmatprep.subr.mxu0 0.0
      %555 = vmatpush1.msra.mxu0 0.0
      %556 = vmatprep.subr.mxu0 0.0
      %557 = vmatpush1.msra.mxu0 0.0
      %558 = vmatprep.subr.mxu0 0.0
      %559 = vmatpush1.msra.mxu0 0.0
      %560 = vmatprep.subr.mxu0 0.0
      %561 = vmatpush1.msra.mxu0 0.0
      %562 = vmatprep.subr.mxu0 0.0
      %563 = vmatpush1.msra.mxu0 0.0
      %564 = vmatprep.subr.mxu0 0.0
      %565 = vmatpush1.msra.mxu0 0.0
      %566 = vmatprep.subr.mxu0 0.0
      %567 = vmatpush1.msra.mxu0 0.0
      %568 = vmatprep.subr.mxu0 0.0
      %569 = vmatpush1.msra.mxu0 0.0
      %570 = vmatprep.subr.mxu0 0.0
      %571 = vmatpush1.msra.mxu0 0.0
      %572 = vmatprep.subr.mxu0 0.0
      %573 = vmatpush1.msra.mxu0 0.0
      %574 = vmatprep.subr.mxu0 0.0
      %575 = vmatpush1.msra.mxu0 0.0
      %576 = vmatprep.subr.mxu0 0.0
      %577 = vmatpush1.msra.mxu0 0.0
      %578 = vmatprep.subr.mxu0 0.0
      %579 = vmatpush1.msra.mxu0 0.0
      %580 = vmatprep.subr.mxu0 0.0
      %581 = vmatpush1.msra.mxu0 0.0
      %582 = vmatprep.subr.mxu0 0.0
      %583 = vmatpush1.msra.mxu0 0.0
      %584 = vmatprep.subr.mxu0 0.0
      %585 = vmatpush1.msra.mxu0 0.0
      %586 = vmatprep.subr.mxu0 0.0
      %587 = vmatpush1.msra.mxu0 0.0
      %588 = vmatprep.subr.mxu0 0.0
      %589 = vmatpush1.msra.mxu0 0.0
      %590 = vmatprep.subr.mxu0 0.0
      %591 = vmatpush1.msra.mxu0 0.0
      %592 = vmatprep.mubr.f32.mxu0 0.0
      %593 = vmatmul.mubr.f32.gmra.mrb[0].mxu0 %v526
      %v594 = vpop.f32.mrb[0].mxu0
      %v595 = vadd.f32 0.0, %v594
      %v596 = vpop.f32.mrb[0].mxu0
      %597 = vdwg.mxu0
      %598 = vrot.lane.b32.xlu0 %v254, 96
      %v599 = vpop.permute.xlu0 %598
      %600 = vrot.lane.b32.xlu0 %v254, 32
      %v601 = vpop.permute.xlu0 %600
      %v602 = vsel %vm262, %v599, 0
      %v604 = vsel %vm262, %v601, 0
      %606 = vmatprep.subr.mxu0 0.0
      %607 = vmatpush1.xpose.msra.mxu0 %v604
      %608 = vmatprep.subr.mxu0 0.0
      %609 = vmatpush1.xpose.msra.mxu0 0.0
      %610 = vmatprep.subr.mxu0 0.0
      %611 = vmatpush1.xpose.msra.mxu0 0.0
      %612 = vmatprep.subr.mxu0 0.0
      %613 = vmatpush1.xpose.msra.mxu0 0.0
      %614 = vmatprep.subr.mxu0 0.0
      %615 = vmatpush1.xpose.msra.mxu0 0.0
      %616 = vmatprep.subr.mxu0 0.0
      %617 = vmatpush1.xpose.msra.mxu0 0.0
      %618 = vmatprep.subr.mxu0 0.0
      %619 = vmatpush1.xpose.msra.mxu0 0.0
      %620 = vmatprep.subr.mxu0 0.0
      %621 = vmatpush1.xpose.msra.mxu0 0.0
      %622 = vmatprep.subr.mxu0 0.0
      %623 = vmatpush1.xpose.msra.mxu0 0.0
      %624 = vmatprep.subr.mxu0 0.0
      %625 = vmatpush1.xpose.msra.mxu0 0.0
      %626 = vmatprep.subr.mxu0 0.0
      %627 = vmatpush1.xpose.msra.mxu0 0.0
      %628 = vmatprep.subr.mxu0 0.0
      %629 = vmatpush1.xpose.msra.mxu0 0.0
      %630 = vmatprep.subr.mxu0 0.0
      %631 = vmatpush1.xpose.msra.mxu0 0.0
      %632 = vmatprep.subr.mxu0 0.0
      %633 = vmatpush1.xpose.msra.mxu0 0.0
      %634 = vmatprep.subr.mxu0 0.0
      %635 = vmatpush1.xpose.msra.mxu0 0.0
      %636 = vmatprep.subr.mxu0 0.0
      %637 = vmatpush1.xpose.msra.mxu0 0.0
      %638 = vmatprep.subr.mxu0 0.0
      %639 = vmatpush1.xpose.msra.mxu0 0.0
      %640 = vmatprep.subr.mxu0 0.0
      %641 = vmatpush1.xpose.msra.mxu0 0.0
      %642 = vmatprep.subr.mxu0 0.0
      %643 = vmatpush1.xpose.msra.mxu0 0.0
      %644 = vmatprep.subr.mxu0 0.0
      %645 = vmatpush1.xpose.msra.mxu0 0.0
      %646 = vmatprep.subr.mxu0 0.0
      %647 = vmatpush1.xpose.msra.mxu0 0.0
      %648 = vmatprep.subr.mxu0 0.0
      %649 = vmatpush1.xpose.msra.mxu0 0.0
      %650 = vmatprep.subr.mxu0 0.0
      %651 = vmatpush1.xpose.msra.mxu0 0.0
      %652 = vmatprep.subr.mxu0 0.0
      %653 = vmatpush1.xpose.msra.mxu0 0.0
      %654 = vmatprep.subr.mxu0 0.0
      %655 = vmatpush1.xpose.msra.mxu0 0.0
      %656 = vmatprep.subr.mxu0 0.0
      %657 = vmatpush1.xpose.msra.mxu0 0.0
      %658 = vmatprep.subr.mxu0 0.0
      %659 = vmatpush1.xpose.msra.mxu0 0.0
      %660 = vmatprep.subr.mxu0 0.0
      %661 = vmatpush1.xpose.msra.mxu0 0.0
      %662 = vmatprep.subr.mxu0 0.0
      %663 = vmatpush1.xpose.msra.mxu0 0.0
      %664 = vmatprep.subr.mxu0 0.0
      %665 = vmatpush1.xpose.msra.mxu0 0.0
      %666 = vmatprep.subr.mxu0 0.0
      %667 = vmatpush1.xpose.msra.mxu0 0.0
      %668 = vmatprep.subr.mxu0 0.0
      %669 = vmatpush1.xpose.msra.mxu0 0.0
      %670 = vmatprep.mubr.f32.mxu0 0.0
      %671 = vmatmul.mubr.f32.gmra.mrb[0].mxu0 %v602
      %v672 = vpop.f32.mrb[0].mxu0
      %v673 = vadd.f32 0.0, %v672
      %v674 = vpop.f32.mrb[0].mxu0
      %675 = vdwg.mxu0
      %v676 = vmul.f32 %v673, 0.25
      %v677 = vadd.f32 %v676, %v342
      %v678 = vsel %vm345, %v677, -inf
      %679 = vmax.xlane.f32.xlu0 %v678
      %v680 = vpop.xlane.xlu0 %679
      %v681 = vsub.f32 %v677, %v680
      %v682 = vmul.f32 %v681, 1.442695
      %v683 = vpow.pop %v682
      %v684 = vsel %vm345, %v683, 0.0
      %685 = vadd.xlane.f32.xlu0 %v684
      %v686 = vpop.xlane.xlu0 %685
      %v687 = vrcp.pop %v686
      %v688 = vmul.f32 %v683, %v687
      %689 = vrot.lane.b32.xlu0 %v255, 96
      %v690 = vpop.permute.xlu0 %689
      %v693 = vsel %vm345, %v688, 0
      %695 = vmatprep.subr.mxu0 0.0
      %696 = vmatpush1.msra.mxu0 %v690
      %697 = vmatprep.subr.mxu0 0.0
      %698 = vmatpush1.msra.mxu0 0.0
      %699 = vmatprep.subr.mxu0 0.0
      %700 = vmatpush1.msra.mxu0 0.0
      %701 = vmatprep.subr.mxu0 0.0
      %702 = vmatpush1.msra.mxu0 0.0
      %703 = vmatprep.subr.mxu0 0.0
      %704 = vmatpush1.msra.mxu0 0.0
      %705 = vmatprep.subr.mxu0 0.0
      %706 = vmatpush1.msra.mxu0 0.0
      %707 = vmatprep.subr.mxu0 0.0
      %708 = vmatpush1.msra.mxu0 0.0
      %709 = vmatprep.subr.mxu0 0.0
      %710 = vmatpush1.msra.mxu0 0.0
      %711 = vmatprep.subr.mxu0 0.0
      %712 = vmatpush1.msra.mxu0 0.0
      %713 = vmatprep.subr.mxu0 0.0
      %714 = vmatpush1.msra.mxu0 0.0
      %715 = vmatprep.subr.mxu0 0.0
      %716 = vmatpush1.msra.mxu0 0.0
      %717 = vmatprep.subr.mxu0 0.0
      %718 = vmatpush1.msra.mxu0 0.0
      %719 = vmatprep.subr.mxu0 0.0
      %720 = vmatpush1.msra.mxu0 0.0
      %721 = vmatprep.subr.mxu0 0.0
      %722 = vmatpush1.msra.mxu0 0.0
      %723 = vmatprep.subr.mxu0 0.0
      %724 = vmatpush1.msra.mxu0 0.0
      %725 = vmatprep.subr.mxu0 0.0
      %726 = vmatpush1.msra.mxu0 0.0
      %727 = vmatprep.subr.mxu0 0.0
      %728 = vmatpush1.msra.mxu0 0.0
      %729 = vmatprep.subr.mxu0 0.0
      %730 = vmatpush1.msra.mxu0 0.0
      %731 = vmatprep.subr.mxu0 0.0
      %732 = vmatpush1.msra.mxu0 0.0
      %733 = vmatprep.subr.mxu0 0.0
      %734 = vmatpush1.msra.mxu0 0.0
      %735 = vmatprep.subr.mxu0 0.0
      %736 = vmatpush1.msra.mxu0 0.0
      %737 = vmatprep.subr.mxu0 0.0
      %738 = vmatpush1.msra.mxu0 0.0
      %739 = vmatprep.subr.mxu0 0.0
      %740 = vmatpush1.msra.mxu0 0.0
      %741 = vmatprep.subr.mxu0 0.0
      %742 = vmatpush1.msra.mxu0 0.0
      %743 = vmatprep.subr.mxu0 0.0
      %744 = vmatpush1.msra.mxu0 0.0
      %745 = vmatprep.subr.mxu0 0.0
      %746 = vmatpush1.msra.mxu0 0.0
      %747 = vmatprep.subr.mxu0 0.0
      %748 = vmatpush1.msra.mxu0 0.0
      %749 = vmatprep.subr.mxu0 0.0
      %750 = vmatpush1.msra.mxu0 0.0
      %751 = vmatprep.subr.mxu0 0.0
      %752 = vmatpush1.msra.mxu0 0.0
      %753 = vmatprep.subr.mxu0 0.0
      %754 = vmatpush1.msra.mxu0 0.0
      %755 = vmatprep.subr.mxu0 0.0
      %756 = vmatpush1.msra.mxu0 0.0
      %757 = vmatprep.subr.mxu0 0.0
      %758 = vmatpush1.msra.mxu0 0.0
      %759 = vmatprep.mubr.f32.mxu0 0.0
      %760 = vmatmul.mubr.f32.gmra.mrb[0].mxu0 %v693
      %v761 = vpop.f32.mrb[0].mxu0
      %v762 = vadd.f32 0.0, %v761
      %v763 = vpop.f32.mrb[0].mxu0
      %764 = vdwg.mxu0
      %765 = vrot.lane.b32.xlu0 %v254, 80
      %v766 = vpop.permute.xlu0 %765
      %767 = vrot.lane.b32.xlu0 %v254, 16
      %v768 = vpop.permute.xlu0 %767
      %v769 = vsel %vm262, %v766, 0
      %v771 = vsel %vm262, %v768, 0
      %773 = vmatprep.subr.mxu0 0.0
      %774 = vmatpush1.xpose.msra.mxu0 %v771
      %775 = vmatprep.subr.mxu0 0.0
      %776 = vmatpush1.xpose.msra.mxu0 0.0
      %777 = vmatprep.subr.mxu0 0.0
      %778 = vmatpush1.xpose.msra.mxu0 0.0
      %779 = vmatprep.subr.mxu0 0.0
      %780 = vmatpush1.xpose.msra.mxu0 0.0
      %781 = vmatprep.subr.mxu0 0.0
      %782 = vmatpush1.xpose.msra.mxu0 0.0
      %783 = vmatprep.subr.mxu0 0.0
      %784 = vmatpush1.xpose.msra.mxu0 0.0
      %785 = vmatprep.subr.mxu0 0.0
      %786 = vmatpush1.xpose.msra.mxu0 0.0
      %787 = vmatprep.subr.mxu0 0.0
      %788 = vmatpush1.xpose.msra.mxu0 0.0
      %789 = vmatprep.subr.mxu0 0.0
      %790 = vmatpush1.xpose.msra.mxu0 0.0
      %791 = vmatprep.subr.mxu0 0.0
      %792 = vmatpush1.xpose.msra.mxu0 0.0
      %793 = vmatprep.subr.mxu0 0.0
      %794 = vmatpush1.xpose.msra.mxu0 0.0
      %795 = vmatprep.subr.mxu0 0.0
      %796 = vmatpush1.xpose.msra.mxu0 0.0
      %797 = vmatprep.subr.mxu0 0.0
      %798 = vmatpush1.xpose.msra.mxu0 0.0
      %799 = vmatprep.subr.mxu0 0.0
      %800 = vmatpush1.xpose.msra.mxu0 0.0
      %801 = vmatprep.subr.mxu0 0.0
      %802 = vmatpush1.xpose.msra.mxu0 0.0
      %803 = vmatprep.subr.mxu0 0.0
      %804 = vmatpush1.xpose.msra.mxu0 0.0
      %805 = vmatprep.subr.mxu0 0.0
      %806 = vmatpush1.xpose.msra.mxu0 0.0
      %807 = vmatprep.subr.mxu0 0.0
      %808 = vmatpush1.xpose.msra.mxu0 0.0
      %809 = vmatprep.subr.mxu0 0.0
      %810 = vmatpush1.xpose.msra.mxu0 0.0
      %811 = vmatprep.subr.mxu0 0.0
      %812 = vmatpush1.xpose.msra.mxu0 0.0
      %813 = vmatprep.subr.mxu0 0.0
      %814 = vmatpush1.xpose.msra.mxu0 0.0
      %815 = vmatprep.subr.mxu0 0.0
      %816 = vmatpush1.xpose.msra.mxu0 0.0
      %817 = vmatprep.subr.mxu0 0.0
      %818 = vmatpush1.xpose.msra.mxu0 0.0
      %819 = vmatprep.subr.mxu0 0.0
      %820 = vmatpush1.xpose.msra.mxu0 0.0
      %821 = vmatprep.subr.mxu0 0.0
      %822 = vmatpush1.xpose.msra.mxu0 0.0
      %823 = vmatprep.subr.mxu0 0.0
      %824 = vmatpush1.xpose.msra.mxu0 0.0
      %825 = vmatprep.subr.mxu0 0.0
      %826 = vmatpush1.xpose.msra.mxu0 0.0
      %827 = vmatprep.subr.mxu0 0.0
      %828 = vmatpush1.xpose.msra.mxu0 0.0
      %829 = vmatprep.subr.mxu0 0.0
      %830 = vmatpush1.xpose.msra.mxu0 0.0
      %831 = vmatprep.subr.mxu0 0.0
      %832 = vmatpush1.xpose.msra.mxu0 0.0
      %833 = vmatprep.subr.mxu0 0.0
      %834 = vmatpush1.xpose.msra.mxu0 0.0
      %835 = vmatprep.subr.mxu0 0.0
      %836 = vmatpush1.xpose.msra.mxu0 0.0
      %837 = vmatprep.mubr.f32.mxu0 0.0
      %838 = vmatmul.mubr.f32.gmra.mrb[0].mxu0 %v769
      %v839 = vpop.f32.mrb[0].mxu0
      %v840 = vadd.f32 0.0, %v839
      %v841 = vpop.f32.mrb[0].mxu0
      %842 = vdwg.mxu0
      %v843 = vmul.f32 %v840, 0.25
      %v844 = vadd.f32 %v843, %v342
      %v845 = vsel %vm345, %v844, -inf
      %846 = vmax.xlane.f32.xlu0 %v845
      %v847 = vpop.xlane.xlu0 %846
      %v848 = vsub.f32 %v844, %v847
      %v849 = vmul.f32 %v848, 1.442695
      %v850 = vpow.pop %v849
      %v851 = vsel %vm345, %v850, 0.0
      %852 = vadd.xlane.f32.xlu0 %v851
      %v853 = vpop.xlane.xlu0 %852
      %v854 = vrcp.pop %v853
      %v855 = vmul.f32 %v850, %v854
      %856 = vrot.lane.b32.xlu0 %v255, 80
      %v857 = vpop.permute.xlu0 %856
      %v860 = vsel %vm345, %v855, 0
      %862 = vmatprep.subr.mxu0 0.0
      %863 = vmatpush1.msra.mxu0 %v857
      %864 = vmatprep.subr.mxu0 0.0
      %865 = vmatpush1.msra.mxu0 0.0
      %866 = vmatprep.subr.mxu0 0.0
      %867 = vmatpush1.msra.mxu0 0.0
      %868 = vmatprep.subr.mxu0 0.0
      %869 = vmatpush1.msra.mxu0 0.0
      %870 = vmatprep.subr.mxu0 0.0
      %871 = vmatpush1.msra.mxu0 0.0
      %872 = vmatprep.subr.mxu0 0.0
      %873 = vmatpush1.msra.mxu0 0.0
      %874 = vmatprep.subr.mxu0 0.0
      %875 = vmatpush1.msra.mxu0 0.0
      %876 = vmatprep.subr.mxu0 0.0
      %877 = vmatpush1.msra.mxu0 0.0
      %878 = vmatprep.subr.mxu0 0.0
      %879 = vmatpush1.msra.mxu0 0.0
      %880 = vmatprep.subr.mxu0 0.0
      %881 = vmatpush1.msra.mxu0 0.0
      %882 = vmatprep.subr.mxu0 0.0
      %883 = vmatpush1.msra.mxu0 0.0
      %884 = vmatprep.subr.mxu0 0.0
      %885 = vmatpush1.msra.mxu0 0.0
      %886 = vmatprep.subr.mxu0 0.0
      %887 = vmatpush1.msra.mxu0 0.0
      %888 = vmatprep.subr.mxu0 0.0
      %889 = vmatpush1.msra.mxu0 0.0
      %890 = vmatprep.subr.mxu0 0.0
      %891 = vmatpush1.msra.mxu0 0.0
      %892 = vmatprep.subr.mxu0 0.0
      %893 = vmatpush1.msra.mxu0 0.0
      %894 = vmatprep.subr.mxu0 0.0
      %895 = vmatpush1.msra.mxu0 0.0
      %896 = vmatprep.subr.mxu0 0.0
      %897 = vmatpush1.msra.mxu0 0.0
      %898 = vmatprep.subr.mxu0 0.0
      %899 = vmatpush1.msra.mxu0 0.0
      %900 = vmatprep.subr.mxu0 0.0
      %901 = vmatpush1.msra.mxu0 0.0
      %902 = vmatprep.subr.mxu0 0.0
      %903 = vmatpush1.msra.mxu0 0.0
      %904 = vmatprep.subr.mxu0 0.0
      %905 = vmatpush1.msra.mxu0 0.0
      %906 = vmatprep.subr.mxu0 0.0
      %907 = vmatpush1.msra.mxu0 0.0
      %908 = vmatprep.subr.mxu0 0.0
      %909 = vmatpush1.msra.mxu0 0.0
      %910 = vmatprep.subr.mxu0 0.0
      %911 = vmatpush1.msra.mxu0 0.0
      %912 = vmatprep.subr.mxu0 0.0
      %913 = vmatpush1.msra.mxu0 0.0
      %914 = vmatprep.subr.mxu0 0.0
      %915 = vmatpush1.msra.mxu0 0.0
      %916 = vmatprep.subr.mxu0 0.0
      %917 = vmatpush1.msra.mxu0 0.0
      %918 = vmatprep.subr.mxu0 0.0
      %919 = vmatpush1.msra.mxu0 0.0
      %920 = vmatprep.subr.mxu0 0.0
      %921 = vmatpush1.msra.mxu0 0.0
      %922 = vmatprep.subr.mxu0 0.0
      %923 = vmatpush1.msra.mxu0 0.0
      %924 = vmatprep.subr.mxu0 0.0
      %925 = vmatpush1.msra.mxu0 0.0
      %926 = vmatprep.mubr.f32.mxu0 0.0
      %927 = vmatmul.mubr.f32.gmra.mrb[0].mxu0 %v860
      %v928 = vpop.f32.mrb[0].mxu0
      %v929 = vadd.f32 0.0, %v928
      %v930 = vpop.f32.mrb[0].mxu0
      %931 = vdwg.mxu0
      %933 = vrot.lane.b32.xlu0 %v595, 16
      %v934 = vpop.permute.xlu0 %933
      %937 = vrot.lane.b32.xlu0 %v762, 32
      %v938 = vpop.permute.xlu0 %937
      %941 = vrot.lane.b32.xlu0 %v929, 48
      %v942 = vpop.permute.xlu0 %941
      %v944 = vsel %vm262, %v427, %v934
      %vm945 = vcmask 261120
      %v946 = vsel %vm945, %v944, %v938
      %vm947 = vcmask 392192
      %v948 = vsel %vm947, %v946, %v942
      %v949 = vld [vmem:[%s2] sm:$0xff]
      %v950 = vld [vmem:[%s2 + $0x8] sm:$0xff]
      %v951 = vld [vmem:[%s2 + $0x10] sm:$0xff]
      %v952 = vld [vmem:[%s2 + $0x18] sm:$0xff]
      %v953 = vld [vmem:[%s2 + $0x20] sm:$0xff]
      %v954 = vld [vmem:[%s2 + $0x28] sm:$0xff]
      %v955 = vld [vmem:[%s2 + $0x30] sm:$0xff]
      %v956 = vld [vmem:[%s2 + $0x38] sm:$0xff]
      %v957 = vld [vmem:[%s3] sm:$0x1]
      %v959 = vlaneseq
      %v960 = vshrl.u32 %v959, 7
      %v961 = vsub.s32 0, %v960
      %v962 = vrot.slane %v957, %v961
      %vm964 = vcmask 523264
      %v966 = vsel %vm964, %v948, 0
      %968 = vmatprep.subr.mxu0 0.0
      %969 = vmatpush1.msra.mxu0 %v949
      %970 = vmatprep.subr.mxu0 0.0
      %971 = vmatpush1.msra.mxu0 %v950
      %972 = vmatprep.subr.mxu0 0.0
      %973 = vmatpush1.msra.mxu0 %v951
      %974 = vmatprep.subr.mxu0 0.0
      %975 = vmatpush1.msra.mxu0 %v952
      %976 = vmatprep.subr.mxu0 0.0
      %977 = vmatpush1.msra.mxu0 %v953
      %978 = vmatprep.subr.mxu0 0.0
      %979 = vmatpush1.msra.mxu0 %v954
      %980 = vmatprep.subr.mxu0 0.0
      %981 = vmatpush1.msra.mxu0 %v955
      %982 = vmatprep.subr.mxu0 0.0
      %983 = vmatpush1.msra.mxu0 %v956
      %984 = vmatprep.subr.mxu0 0.0
      %985 = vmatpush1.msra.mxu0 0.0
      %986 = vmatprep.subr.mxu0 0.0
      %987 = vmatpush1.msra.mxu0 0.0
      %988 = vmatprep.subr.mxu0 0.0
      %989 = vmatpush1.msra.mxu0 0.0
      %990 = vmatprep.subr.mxu0 0.0
      %991 = vmatpush1.msra.mxu0 0.0
      %992 = vmatprep.subr.mxu0 0.0
      %993 = vmatpush1.msra.mxu0 0.0
      %994 = vmatprep.subr.mxu0 0.0
      %995 = vmatpush1.msra.mxu0 0.0
      %996 = vmatprep.subr.mxu0 0.0
      %997 = vmatpush1.msra.mxu0 0.0
      %998 = vmatprep.subr.mxu0 0.0
      %999 = vmatpush1.msra.mxu0 0.0
      %1000 = vmatprep.subr.mxu0 0.0
      %1001 = vmatpush1.msra.mxu0 0.0
      %1002 = vmatprep.subr.mxu0 0.0
      %1003 = vmatpush1.msra.mxu0 0.0
      %1004 = vmatprep.subr.mxu0 0.0
      %1005 = vmatpush1.msra.mxu0 0.0
      %1006 = vmatprep.subr.mxu0 0.0
      %1007 = vmatpush1.msra.mxu0 0.0
      %1008 = vmatprep.subr.mxu0 0.0
      %1009 = vmatpush1.msra.mxu0 0.0
      %1010 = vmatprep.subr.mxu0 0.0
      %1011 = vmatpush1.msra.mxu0 0.0
      %1012 = vmatprep.subr.mxu0 0.0
      %1013 = vmatpush1.msra.mxu0 0.0
      %1014 = vmatprep.subr.mxu0 0.0
      %1015 = vmatpush1.msra.mxu0 0.0
      %1016 = vmatprep.subr.mxu0 0.0
      %1017 = vmatpush1.msra.mxu0 0.0
      %1018 = vmatprep.subr.mxu0 0.0
      %1019 = vmatpush1.msra.mxu0 0.0
      %1020 = vmatprep.subr.mxu0 0.0
      %1021 = vmatpush1.msra.mxu0 0.0
      %1022 = vmatprep.subr.mxu0 0.0
      %1023 = vmatpush1.msra.mxu0 0.0
      %1024 = vmatprep.subr.mxu0 0.0
      %1025 = vmatpush1.msra.mxu0 0.0
      %1026 = vmatprep.subr.mxu0 0.0
      %1027 = vmatpush1.msra.mxu0 0.0
      %1028 = vmatprep.subr.mxu0 0.0
      %1029 = vmatpush1.msra.mxu0 0.0
      %1030 = vmatprep.subr.mxu0 0.0
      %1031 = vmatpush1.msra.mxu0 0.0
      %1032 = vmatprep.mubr.f32.mxu0 0.0
      %1033 = vmatmul.mubr.f32.gmra.mrb[0].mxu0 %v966
      %v1034 = vpop.f32.mrb[0].mxu0
      %v1035 = vadd.f32 %v962, %v1034
      %v1036 = vpop.f32.mrb[0].mxu0
      %1037 = vdwg.mxu0
      %v1038 = vld [vmem:[%s249] sm:$0xff]
      %v1039 = vadd.f32 %v1035, %v1038
      %1040 = vst.msk [vmem:[%s253] sm:$0xff] %vm964, %v1039
      %p1041 = scmp.lt.s32.totalorder %s16, 1
      %s1042 = scalar_select %p1041, %s16, 1
      %s1043 = smul.addr %s1042, 8
      %s1044 = scalar_lea.vmem %s5, %s1043
      // Predicated region
      $region41: #{encoder_block.4} parent=39 // pred_check
        %p1045 = pneg %p154
      $region42: #{encoder_block.4} parent=39 // pred_check_branch
        %1047 = sbr.rel (%p1045) target = $region44
      $region43: #{encoder_block.4} parent=39 // pred_region
        _
      $region44: #{encoder_block.4} parent=39 // pred_fallthru
        _
    $region40: #{encoder_block.4} parent=5 // pred_fallthru
      _
    %p1048 = scmp.le.s32.totalorder 2, %s11
    // Predicated region
    $region45: #{encoder_block.4} parent=5 // pred_check
      %p1049 = pneg %p1048
    $region46: #{encoder_block.4} parent=5 // pred_check_branch
      %1051 = sbr.rel (%p1049) target = $region48
    $region47: #{encoder_block.4} parent=5 // pred_region
      %s1052 = ssub.s32 %s11, 2
      // Predicated region
      $region49: #{encoder_block.4} parent=47 // pred_check
        %p1053 = pneg %p160
      $region50: #{encoder_block.4} parent=47 // pred_check_branch
        %1055 = sbr.rel (%p1053) target = $region52
      $region51: #{encoder_block.4} parent=47 // pred_region
        %p1056 = scmp.lt.s32.totalorder %s17, 1
        %s1057 = scalar_select %p1056, %s17, 1
        %s1058 = smul.addr %s1057, 8
        %s1059 = scalar_lea.vmem %s5, %s1058
      $region52: #{encoder_block.4} parent=47 // pred_fallthru
        _
    $region48: #{encoder_block.4} parent=5 // pred_fallthru
      _
  $region6: #{encoder_block.4} parent=0 // loop_footer
    %s15 = sadd.s32 1, %s11
  $region7: #{encoder_block.4} parent=0 // loop_footer_branch
    %10 = sbr.rel target = $region3
  $region8: #{encoder_block.4} parent=0 // loop_exit
    _

</llo_original>
